<compile_context>
chip_gen: v5e
topology: v5e:2x2
jax: 0.10.0
libtpu: 0.0.40
codegen_flags: <defaults>
</compile_context>

<pallas_src>
import jax
import jax.numpy as jnp
from jax.experimental import pallas as pl
from jax.experimental.pallas import tpu as pltpu


def make_decoder_kernel(L, T, B, H, H2, A2, in_size):
    """Single-step attention + multi-layer LSTM decoder, whole forward in-kernel.

    Encoder rows arrive flattened b-major: row r = b*T + t, shape (B*T, H), so
    segment b is the contiguous row block [b*T, (b+1)*T).
    """
    f32 = jnp.float32

    def kernel(enc_ref, x_ref, h0_ref, c0_ref,
               att_w_ref, att_b_ref, wa_w_ref, out_w_ref, out_b_ref,
               lstm_w_ref, lstm_b_ref,
               out_ref, state_ref):
        wdt = att_w_ref.dtype           # dtype fed to the MXU (f32 or bf16)

        # ---- unpack packed weight slabs (static, sublane-aligned slices) ----
        wah1 = att_w_ref[0:H, :]                   # (H,  H2)   atten_h_1
        wah0 = att_w_ref[H:H + H2, :]              # (H2, H2)   atten_h0
        wahn = att_w_ref[H + H2:H + 2 * H2, :]     # (H2, H2)   atten_hn
        bah1 = att_b_ref[0:1, :]                   # (1,  H2)   f32
        batt = att_b_ref[1:2, :]                   # (1,  H2)   f32 (= bah0 + bahn)
        wa1 = wa_w_ref[0:H2, :]                    # (H2, A2)
        wa2 = wa_w_ref[H2:H2 + 1, :]               # (1,  A2)

        # ---------------- attention: full-width MXU work over all B*T rows ---
        enc = enc_ref[...]                                                    # (BT, H)
        enc_p = jnp.dot(enc, wah1, preferred_element_type=f32) + bah1         # (BT, H2)
        dec_last = h0_ref[L - 1]                                              # (B, H2)
        proj = (jnp.dot(dec_last.astype(wdt), wahn, preferred_element_type=f32)
                + batt)                                                       # (B, H2)
        s = jnp.dot(enc_p.astype(wdt), wah0, preferred_element_type=f32)      # (BT, H2)
        # wa1 is bias-free, so tanh(wa1 @ (s_enc + s_dec)) == tanh(su + pu):
        su = jnp.dot(s.astype(wdt), wa1, preferred_element_type=f32)          # (BT, A2)
        pu = jnp.dot(proj.astype(wdt), wa1, preferred_element_type=f32)       # (B,  A2)

        # ------------- per-segment softmax + context (cheap VPU/XLU part) ----
        # Segment b = contiguous rows [b*T, (b+1)*T); T % 8 == 0 keeps every
        # slice sublane-aligned.  Per-segment max keeps exp() well scaled.
        # B is tiny here; at production B/T become grid axes (see TODO above).
        ctx = []
        for b in range(B):
            r0 = b * T
            u_b = jnp.tanh(su[r0:r0 + T, :] + pu[b:b + 1, :])                 # (T, A2)
            e_b = jnp.sum(u_b * wa2, axis=-1, keepdims=True)                  # (T, 1)
            m_b = jnp.max(e_b, axis=0, keepdims=True)                         # (1, 1)
            p_b = jnp.exp(e_b - m_b)                                          # (T, 1)
            den = jnp.sum(p_b, axis=0, keepdims=True)                         # (1, 1)
            num = jnp.sum(p_b * enc_p[r0:r0 + T, :], axis=0, keepdims=True)   # (1, H2)
            # approx=True would move the divide to the EUP; kept exact so the
            # strict f32 check below holds at 1e-4.
            ctx.append(num * pl.reciprocal(den, approx=False))
        c_att = jnp.concatenate(ctx, axis=0)                                  # (B, H2)

        # ---------------- single-step multi-layer LSTM ------------------------
        c_att_w = c_att.astype(wdt)
        x_cur = x_ref[...].astype(wdt)
        for l in range(L):
            h_prev = h0_ref[l]                                                # (B, H2)
            c_prev = c0_ref[l]                                                # (B, H2)
            b_l = lstm_b_ref[l:l + 1, :]                                      # (1, 4*H2) f32
            if l == 0:
                # concat-free layer 0: w_ih split into x / context row blocks.
                gates = (jnp.dot(x_cur, lstm_w_ref[0:in_size, :],
                                 preferred_element_type=f32)
                         + jnp.dot(c_att_w, lstm_w_ref[in_size:in_size + H2, :],
                                   preferred_element_type=f32)
                         + jnp.dot(h_prev.astype(wdt),
                                   lstm_w_ref[in_size + H2:in_size + 2 * H2, :],
                                   preferred_element_type=f32)
                         + b_l)
            else:
                base = in_size + 2 * H2 + (l - 1) * 2 * H2
                gates = (jnp.dot(x_cur, lstm_w_ref[base:base + H2, :],
                                 preferred_element_type=f32)
                         + jnp.dot(h_prev.astype(wdt),
                                   lstm_w_ref[base + H2:base + 2 * H2, :],
                                   preferred_element_type=f32)
                         + b_l)
            # Gate slices are lane-tile aligned when H2 % 128 == 0 (true here).
            i_g = jax.nn.sigmoid(gates[:, 0:H2])
            f_g = jax.nn.sigmoid(gates[:, H2:2 * H2])
            g_g = jnp.tanh(gates[:, 2 * H2:3 * H2])
            o_g = jax.nn.sigmoid(gates[:, 3 * H2:4 * H2])
            c_new = f_g * c_prev + i_g * g_g
            h_new = o_g * jnp.tanh(c_new)
            # direct slab stores (no concat copy): packed [h | c] per layer
            state_ref[l, :, 0:H2] = h_new
            state_ref[l, :, H2:2 * H2] = c_new
            x_cur = h_new.astype(wdt)

        # ---------------- output projection -----------------------------------
        out_ref[...] = (jnp.dot(x_cur, out_w_ref[...], preferred_element_type=f32)
                        + out_b_ref[...])

    return kernel


def decoder_forward(params, cur_input, enc_states, h0, c0,
                    weight_dtype=jnp.float32):
    L, B, H2 = h0.shape
    T, _, H = enc_states.shape
    in_size = cur_input.shape[1]
    A2 = params["wa1"].shape[0]
    f32 = jnp.float32
    wdt = weight_dtype

    # b-major flattening of encoder states: row r = b*T + t (done by XLA, free
    # relative to the kernel) — each segment is a contiguous T-row block.
    enc_flat = jnp.transpose(enc_states, (1, 0, 2)).reshape(B * T, H).astype(wdt)

    # ---- pack parameters into a few contiguous slabs (fewer input DMAs) ----
    att_w = jnp.concatenate(
        [params["wah1"].T, params["wah0"].T, params["wahn"].T], axis=0).astype(wdt)
    att_b = jnp.stack(
        [params["bah1"], params["bah0"] + params["bahn"]], axis=0).astype(f32)
    wa_w = jnp.concatenate([params["wa1"].T, params["wa2"]], axis=0).astype(wdt)
    out_w = params["out_w"].T.astype(wdt)                      # (H2, 1)
    out_b = params["out_b"].reshape(1, 1).astype(f32)

    w_ih0_t = params["w_ih"][0].T                              # (in+H2, 4*H2)
    lstm_rows = [w_ih0_t[:in_size], w_ih0_t[in_size:], params["w_hh"][0].T]
    for l in range(1, L):
        lstm_rows += [params["w_ih"][l].T, params["w_hh"][l].T]
    lstm_w = jnp.concatenate(lstm_rows, axis=0).astype(wdt)    # (in+2H2+(L-1)*2H2, 4H2)
    lstm_b = jnp.stack(
        [params["b_ih"][l] + params["b_hh"][l] for l in range(L)], axis=0).astype(f32)

    inputs = [enc_flat, cur_input.astype(f32), h0.astype(f32), c0.astype(f32),
              att_w, att_b, wa_w, out_w, out_b, lstm_w, lstm_b]

    out_shapes = (
        jax.ShapeDtypeStruct((B, 1), f32),
        jax.ShapeDtypeStruct((L, B, 2 * H2), f32),             # packed [h | c]
    )

    # vmem_limit sized from the actual operand footprint (+ headroom for
    # temporaries); stays well under the physical limit on v5e/v6e/v7x.
    in_bytes = sum(int(x.size) * jnp.dtype(x.dtype).itemsize for x in inputs)
    out_bytes = (B * 1 + L * B * 2 * H2) * 4
    vmem_limit = int(min(96 * 1024 * 1024,
                         max(4 * 1024 * 1024, 8 * (in_bytes + out_bytes))))

    vmem = pl.BlockSpec(memory_space=pltpu.MemorySpace.VMEM)
    fn = pl.pallas_call(
        make_decoder_kernel(L, T, B, H, H2, A2, in_size),
        out_shape=out_shapes,
        in_specs=[vmem] * len(inputs),
        out_specs=(vmem, vmem),
        compiler_params=pltpu.CompilerParams(vmem_limit_bytes=vmem_limit),
    )
    out, state = fn(*inputs)
    return out, state[:, :, :H2], state[:, :, H2:]


def decoder_reference(params, cur_input, enc_states, h0, c0):
    """Pure-JAX mirror of the PyTorch Decoder.forward (atten=True)."""
    def linear(x, w, b=None):
        y = x @ w.T
        return y if b is None else y + b

    L, _, H2 = h0.shape
    dec = h0[-1]
    enc_p = linear(enc_states, params["wah1"], params["bah1"])            # (T,B,2H)
    s = (linear(enc_p, params["wah0"], params["bah0"])
         + linear(dec, params["wahn"], params["bahn"]))
    e = linear(jnp.tanh(linear(s, params["wa1"])), params["wa2"])         # (T,B,1)
    alpha = jax.nn.softmax(e, axis=0)
    c_att = jnp.sum(alpha * enc_p, axis=0)                                # (B,2H)

    x = jnp.concatenate([cur_input, c_att], axis=1)
    hn, cn = [], []
    for l in range(L):
        gates = (x @ params["w_ih"][l].T + params["b_ih"][l]
                 + h0[l] @ params["w_hh"][l].T + params["b_hh"][l])
        i_g = jax.nn.sigmoid(gates[:, :H2])
        f_g = jax.nn.sigmoid(gates[:, H2:2 * H2])
        g_g = jnp.tanh(gates[:, 2 * H2:3 * H2])
        o_g = jax.nn.sigmoid(gates[:, 3 * H2:])
        c_new = f_g * c0[l] + i_g * g_g
        h_new = o_g * jnp.tanh(c_new)
        hn.append(h_new)
        cn.append(c_new)
        x = h_new
    out = x @ params["out_w"].T + params["out_b"]
    return out, jnp.stack(hn), jnp.stack(cn)


if __name__ == "__main__":
    # H=64 -> H2=128 and A=64 -> A2=128 keep gate slices / state stores / most
    # matmul K,N dims lane-tile (128) aligned, while staying small.
    B, T, in_size, H, L, A = 2, 8, 8, 64, 2, 64
    H2, A2 = 2 * H, 2 * A

    keys = iter(jax.random.split(jax.random.PRNGKey(0), 64))

    def rnd(shape, scale=0.1):
        return scale * jax.random.normal(next(keys), shape, dtype=jnp.float32)

    params = {
        "wah1": rnd((H2, H)),  "bah1": rnd((H2,)),
        "wah0": rnd((H2, H2)), "bah0": rnd((H2,)),
        "wahn": rnd((H2, H2)), "bahn": rnd((H2,)),
        "wa1": rnd((A2, H2)),  "wa2": rnd((1, A2)),
        "w_ih": [rnd((4 * H2, in_size + H2))] + [rnd((4 * H2, H2)) for _ in range(L - 1)],
        "w_hh": [rnd((4 * H2, H2)) for _ in range(L)],
        "b_ih": [rnd((4 * H2,)) for _ in range(L)],
        "b_hh": [rnd((4 * H2,)) for _ in range(L)],
        "out_w": rnd((1, H2)), "out_b": rnd((1,)),
    }

    cur_input = rnd((B, in_size), scale=1.0)
    enc_states = rnd((T, B, H), scale=1.0)
    h0 = rnd((L, B, H2), scale=1.0)
    c0 = rnd((L, B, H2), scale=1.0)

    ref_out, ref_hn, ref_cn = decoder_reference(params, cur_input, enc_states, h0, c0)

    # ---- f32 weight path: strict numerical check ----
    out, hn, cn = decoder_forward(params, cur_input, enc_states, h0, c0,
                                  weight_dtype=jnp.float32)
    jax.block_until_ready((out, hn, cn))
    assert out.shape == (B, 1) and hn.shape == (L, B, H2) and cn.shape == (L, B, H2)
    assert jnp.allclose(out, ref_out, rtol=1e-4, atol=1e-4)
    assert jnp.allclose(hn, ref_hn, rtol=1e-4, atol=1e-4)
    assert jnp.allclose(cn, ref_cn, rtol=1e-4, atol=1e-4)

    # ---- bf16 weight/activation path (f32 accumulation): loose sanity check
    # (tolerance reflects bf16 rounding of weights/activations only).
    out16, hn16, cn16 = decoder_forward(params, cur_input, enc_states, h0, c0,
                                        weight_dtype=jnp.bfloat16)
    jax.block_until_ready((out16, hn16, cn16))
    assert jnp.allclose(out16, ref_out, rtol=1e-1, atol=1e-1)
    assert jnp.allclose(hn16, ref_hn, rtol=1e-1, atol=1e-1)
    assert jnp.allclose(cn16, ref_cn, rtol=1e-1, atol=1e-1)

    print("KERNEL_OK")
</pallas_src>

<mosaic_0001>
module attributes {stable_mosaic.version = 11 : i64} {
  func.func @kernel(%arg0: memref<16x64xf32, #tpu.memory_space<vmem>>, %arg1: memref<2x8xf32, #tpu.memory_space<vmem>>, %arg2: memref<2x2x128xf32, #tpu.memory_space<vmem>>, %arg3: memref<2x2x128xf32, #tpu.memory_space<vmem>>, %arg4: memref<320x128xf32, #tpu.memory_space<vmem>>, %arg5: memref<2x128xf32, #tpu.memory_space<vmem>>, %arg6: memref<129x128xf32, #tpu.memory_space<vmem>>, %arg7: memref<128x1xf32, #tpu.memory_space<vmem>>, %arg8: memref<1x1xf32, #tpu.memory_space<vmem>>, %arg9: memref<520x512xf32, #tpu.memory_space<vmem>>, %arg10: memref<2x512xf32, #tpu.memory_space<vmem>>, %arg11: memref<2x1xf32, #tpu.memory_space<vmem>>, %arg12: memref<2x2x256xf32, #tpu.memory_space<vmem>>) attributes {dimension_semantics = [], scalar_prefetch = 0 : i64, scratch_operands = 0 : i64, tpu.core_type = #tpu.core_type<tc>} {
    %c0 = arith.constant 0 : index
    %c0_0 = arith.constant 0 : index
    %0 = vector.load %arg4[%c0, %c0_0] : memref<320x128xf32, #tpu.memory_space<vmem>>, vector<64x128xf32>
    %c64 = arith.constant 64 : index
    %c0_1 = arith.constant 0 : index
    %1 = vector.load %arg4[%c64, %c0_1] : memref<320x128xf32, #tpu.memory_space<vmem>>, vector<128x128xf32>
    %c192 = arith.constant 192 : index
    %c0_2 = arith.constant 0 : index
    %2 = vector.load %arg4[%c192, %c0_2] : memref<320x128xf32, #tpu.memory_space<vmem>>, vector<128x128xf32>
    %c0_3 = arith.constant 0 : index
    %c0_4 = arith.constant 0 : index
    %3 = vector.load %arg5[%c0_3, %c0_4] : memref<2x128xf32, #tpu.memory_space<vmem>>, vector<1x128xf32>
    %c1 = arith.constant 1 : index
    %c0_5 = arith.constant 0 : index
    %4 = vector.load %arg5[%c1, %c0_5] : memref<2x128xf32, #tpu.memory_space<vmem>>, vector<1x128xf32>
    %c0_6 = arith.constant 0 : index
    %c0_7 = arith.constant 0 : index
    %5 = vector.load %arg6[%c0_6, %c0_7] : memref<129x128xf32, #tpu.memory_space<vmem>>, vector<128x128xf32>
    %c128 = arith.constant 128 : index
    %c0_8 = arith.constant 0 : index
    %6 = vector.load %arg6[%c128, %c0_8] : memref<129x128xf32, #tpu.memory_space<vmem>>, vector<1x128xf32>
    %c0_9 = arith.constant 0 : index
    %c0_10 = arith.constant 0 : index
    %7 = vector.load %arg0[%c0_9, %c0_10] : memref<16x64xf32, #tpu.memory_space<vmem>>, vector<16x64xf32>
    %cst = arith.constant dense<0.000000e+00> : vector<16x128xf32>
    %8 = tpu.matmul %7, %0, %cst {dimension_numbers = #tpu.dot_dimension_numbers<[1], [0], [0], [1], [0, 0, 1, 1], [], []>} : vector<16x64xf32>, vector<64x128xf32>, vector<16x128xf32> -> vector<16x128xf32>
    %9 = vector.broadcast %3 : vector<1x128xf32> to vector<16x128xf32>
    %10 = arith.addf %8, %9 : vector<16x128xf32>
    %c1_11 = arith.constant 1 : index
    %c0_12 = arith.constant 0 : index
    %c0_13 = arith.constant 0 : index
    %11 = vector.load %arg2[%c1_11, %c0_12, %c0_13] : memref<2x2x128xf32, #tpu.memory_space<vmem>>, vector<1x2x128xf32>
    %12 = vector.shape_cast %11 : vector<1x2x128xf32> to vector<2x128xf32>
    %cst_14 = arith.constant dense<0.000000e+00> : vector<2x128xf32>
    %13 = tpu.matmul %12, %2, %cst_14 {dimension_numbers = #tpu.dot_dimension_numbers<[1], [0], [0], [1], [0, 0, 1, 1], [], []>} : vector<2x128xf32>, vector<128x128xf32>, vector<2x128xf32> -> vector<2x128xf32>
    %14 = vector.broadcast %4 : vector<1x128xf32> to vector<2x128xf32>
    %15 = arith.addf %13, %14 : vector<2x128xf32>
    %cst_15 = arith.constant dense<0.000000e+00> : vector<16x128xf32>
    %16 = tpu.matmul %10, %1, %cst_15 {dimension_numbers = #tpu.dot_dimension_numbers<[1], [0], [0], [1], [0, 0, 1, 1], [], []>} : vector<16x128xf32>, vector<128x128xf32>, vector<16x128xf32> -> vector<16x128xf32>
    %cst_16 = arith.constant dense<0.000000e+00> : vector<16x128xf32>
    %17 = tpu.matmul %16, %5, %cst_16 {dimension_numbers = #tpu.dot_dimension_numbers<[1], [0], [0], [1], [0, 0, 1, 1], [], []>} : vector<16x128xf32>, vector<128x128xf32>, vector<16x128xf32> -> vector<16x128xf32>
    %cst_17 = arith.constant dense<0.000000e+00> : vector<2x128xf32>
    %18 = tpu.matmul %15, %5, %cst_17 {dimension_numbers = #tpu.dot_dimension_numbers<[1], [0], [0], [1], [0, 0, 1, 1], [], []>} : vector<2x128xf32>, vector<128x128xf32>, vector<2x128xf32> -> vector<2x128xf32>
    %19 = vector.extract_strided_slice %17 {offsets = [0, 0], sizes = [8, 128], strides = [1, 1]} : vector<16x128xf32> to vector<8x128xf32>
    %20 = vector.extract_strided_slice %18 {offsets = [0, 0], sizes = [1, 128], strides = [1, 1]} : vector<2x128xf32> to vector<1x128xf32>
    %21 = vector.broadcast %20 : vector<1x128xf32> to vector<8x128xf32>
    %22 = arith.addf %19, %21 : vector<8x128xf32>
    %23 = math.tanh %22 : vector<8x128xf32>
    %24 = vector.broadcast %6 : vector<1x128xf32> to vector<8x128xf32>
    %25 = arith.mulf %23, %24 : vector<8x128xf32>
    %cst_18 = arith.constant dense<0.000000e+00> : vector<8xf32>
    %26 = vector.multi_reduction <add>, %25, %cst_18 [1] : vector<8x128xf32> to vector<8xf32>
    %27 = vector.shape_cast %26 : vector<8xf32> to vector<8x1xf32>
    %cst_19 = arith.constant dense<0xFF800000> : vector<1xf32>
    %28 = vector.multi_reduction <maximumf>, %27, %cst_19 [0] : vector<8x1xf32> to vector<1xf32>
    %29 = vector.shape_cast %28 : vector<1xf32> to vector<1x1xf32>
    %30 = vector.broadcast %29 : vector<1x1xf32> to vector<8x1xf32>
    %31 = arith.subf %27, %30 : vector<8x1xf32>
    %32 = math.exp %31 : vector<8x1xf32>
    %cst_20 = arith.constant dense<0.000000e+00> : vector<1xf32>
    %33 = vector.multi_reduction <add>, %32, %cst_20 [0] : vector<8x1xf32> to vector<1xf32>
    %34 = vector.shape_cast %33 : vector<1xf32> to vector<1x1xf32>
    %35 = vector.extract_strided_slice %10 {offsets = [0, 0], sizes = [8, 128], strides = [1, 1]} : vector<16x128xf32> to vector<8x128xf32>
    %36 = vector.broadcast %32 : vector<8x1xf32> to vector<8x128xf32>
    %37 = arith.mulf %36, %35 : vector<8x128xf32>
    %cst_21 = arith.constant dense<0.000000e+00> : vector<128xf32>
    %38 = vector.multi_reduction <add>, %37, %cst_21 [0] : vector<8x128xf32> to vector<128xf32>
    %39 = vector.shape_cast %38 : vector<128xf32> to vector<1x128xf32>
    %40 = tpu.reciprocal %34 : vector<1x1xf32> -> vector<1x1xf32>
    %41 = vector.broadcast %40 : vector<1x1xf32> to vector<1x128xf32>
    %42 = arith.mulf %39, %41 : vector<1x128xf32>
    %43 = vector.extract_strided_slice %17 {offsets = [8, 0], sizes = [8, 128], strides = [1, 1]} : vector<16x128xf32> to vector<8x128xf32>
    %44 = vector.extract_strided_slice %18 {offsets = [1, 0], sizes = [1, 128], strides = [1, 1]} : vector<2x128xf32> to vector<1x128xf32>
    %45 = vector.broadcast %44 : vector<1x128xf32> to vector<8x128xf32>
    %46 = arith.addf %43, %45 : vector<8x128xf32>
    %47 = math.tanh %46 : vector<8x128xf32>
    %48 = vector.broadcast %6 : vector<1x128xf32> to vector<8x128xf32>
    %49 = arith.mulf %47, %48 : vector<8x128xf32>
    %cst_22 = arith.constant dense<0.000000e+00> : vector<8xf32>
    %50 = vector.multi_reduction <add>, %49, %cst_22 [1] : vector<8x128xf32> to vector<8xf32>
    %51 = vector.shape_cast %50 : vector<8xf32> to vector<8x1xf32>
    %cst_23 = arith.constant dense<0xFF800000> : vector<1xf32>
    %52 = vector.multi_reduction <maximumf>, %51, %cst_23 [0] : vector<8x1xf32> to vector<1xf32>
    %53 = vector.shape_cast %52 : vector<1xf32> to vector<1x1xf32>
    %54 = vector.broadcast %53 : vector<1x1xf32> to vector<8x1xf32>
    %55 = arith.subf %51, %54 : vector<8x1xf32>
    %56 = math.exp %55 : vector<8x1xf32>
    %cst_24 = arith.constant dense<0.000000e+00> : vector<1xf32>
    %57 = vector.multi_reduction <add>, %56, %cst_24 [0] : vector<8x1xf32> to vector<1xf32>
    %58 = vector.shape_cast %57 : vector<1xf32> to vector<1x1xf32>
    %59 = vector.extract_strided_slice %10 {offsets = [8, 0], sizes = [8, 128], strides = [1, 1]} : vector<16x128xf32> to vector<8x128xf32>
    %60 = vector.broadcast %56 : vector<8x1xf32> to vector<8x128xf32>
    %61 = arith.mulf %60, %59 : vector<8x128xf32>
    %cst_25 = arith.constant dense<0.000000e+00> : vector<128xf32>
    %62 = vector.multi_reduction <add>, %61, %cst_25 [0] : vector<8x128xf32> to vector<128xf32>
    %63 = vector.shape_cast %62 : vector<128xf32> to vector<1x128xf32>
    %64 = tpu.reciprocal %58 : vector<1x1xf32> -> vector<1x1xf32>
    %65 = vector.broadcast %64 : vector<1x1xf32> to vector<1x128xf32>
    %66 = arith.mulf %63, %65 : vector<1x128xf32>
    %67 = tpu.concatenate %42, %66 in 0 : vector<1x128xf32>, vector<1x128xf32> -> vector<2x128xf32>
    %c0_26 = arith.constant 0 : index
    %c0_27 = arith.constant 0 : index
    %68 = vector.load %arg1[%c0_26, %c0_27] : memref<2x8xf32, #tpu.memory_space<vmem>>, vector<2x8xf32>
    %c0_28 = arith.constant 0 : index
    %c0_29 = arith.constant 0 : index
    %c0_30 = arith.constant 0 : index
    %69 = vector.load %arg2[%c0_28, %c0_29, %c0_30] : memref<2x2x128xf32, #tpu.memory_space<vmem>>, vector<1x2x128xf32>
    %70 = vector.shape_cast %69 : vector<1x2x128xf32> to vector<2x128xf32>
    %c0_31 = arith.constant 0 : index
    %c0_32 = arith.constant 0 : index
    %c0_33 = arith.constant 0 : index
    %71 = vector.load %arg3[%c0_31, %c0_32, %c0_33] : memref<2x2x128xf32, #tpu.memory_space<vmem>>, vector<1x2x128xf32>
    %72 = vector.shape_cast %71 : vector<1x2x128xf32> to vector<2x128xf32>
    %c0_34 = arith.constant 0 : index
    %c0_35 = arith.constant 0 : index
    %73 = vector.load %arg10[%c0_34, %c0_35] : memref<2x512xf32, #tpu.memory_space<vmem>>, vector<1x512xf32>
    %c0_36 = arith.constant 0 : index
    %c0_37 = arith.constant 0 : index
    %74 = vector.load %arg9[%c0_36, %c0_37] : memref<520x512xf32, #tpu.memory_space<vmem>>, vector<8x512xf32>
    %cst_38 = arith.constant dense<0.000000e+00> : vector<2x512xf32>
    %75 = tpu.matmul %68, %74, %cst_38 {dimension_numbers = #tpu.dot_dimension_numbers<[1], [0], [0], [1], [0, 0, 1, 1], [], []>} : vector<2x8xf32>, vector<8x512xf32>, vector<2x512xf32> -> vector<2x512xf32>
    %c8 = arith.constant 8 : index
    %c0_39 = arith.constant 0 : index
    %76 = vector.load %arg9[%c8, %c0_39] : memref<520x512xf32, #tpu.memory_space<vmem>>, vector<128x512xf32>
    %cst_40 = arith.constant dense<0.000000e+00> : vector<2x512xf32>
    %77 = tpu.matmul %67, %76, %cst_40 {dimension_numbers = #tpu.dot_dimension_numbers<[1], [0], [0], [1], [0, 0, 1, 1], [], []>} : vector<2x128xf32>, vector<128x512xf32>, vector<2x512xf32> -> vector<2x512xf32>
    %78 = arith.addf %75, %77 : vector<2x512xf32>
    %c136 = arith.constant 136 : index
    %c0_41 = arith.constant 0 : index
    %79 = vector.load %arg9[%c136, %c0_41] : memref<520x512xf32, #tpu.memory_space<vmem>>, vector<128x512xf32>
    %cst_42 = arith.constant dense<0.000000e+00> : vector<2x512xf32>
    %80 = tpu.matmul %70, %79, %cst_42 {dimension_numbers = #tpu.dot_dimension_numbers<[1], [0], [0], [1], [0, 0, 1, 1], [], []>} : vector<2x128xf32>, vector<128x512xf32>, vector<2x512xf32> -> vector<2x512xf32>
    %81 = arith.addf %78, %80 : vector<2x512xf32>
    %82 = vector.broadcast %73 : vector<1x512xf32> to vector<2x512xf32>
    %83 = arith.addf %81, %82 : vector<2x512xf32>
    %84 = vector.extract_strided_slice %83 {offsets = [0, 0], sizes = [2, 128], strides = [1, 1]} : vector<2x512xf32> to vector<2x128xf32>
    %85 = arith.negf %84 : vector<2x128xf32>
    %86 = math.exp %85 : vector<2x128xf32>
    %cst_43 = arith.constant 1.000000e+00 : f32
    %87 = vector.broadcast %cst_43 : f32 to vector<2x128xf32>
    %88 = arith.addf %87, %86 : vector<2x128xf32>
    %89 = arith.divf %87, %88 : vector<2x128xf32>
    %90 = vector.extract_strided_slice %83 {offsets = [0, 128], sizes = [2, 128], strides = [1, 1]} : vector<2x512xf32> to vector<2x128xf32>
    %91 = arith.negf %90 : vector<2x128xf32>
    %92 = math.exp %91 : vector<2x128xf32>
    %cst_44 = arith.constant 1.000000e+00 : f32
    %93 = vector.broadcast %cst_44 : f32 to vector<2x128xf32>
    %94 = arith.addf %93, %92 : vector<2x128xf32>
    %95 = arith.divf %93, %94 : vector<2x128xf32>
    %96 = vector.extract_strided_slice %83 {offsets = [0, 256], sizes = [2, 128], strides = [1, 1]} : vector<2x512xf32> to vector<2x128xf32>
    %97 = math.tanh %96 : vector<2x128xf32>
    %98 = vector.extract_strided_slice %83 {offsets = [0, 384], sizes = [2, 128], strides = [1, 1]} : vector<2x512xf32> to vector<2x128xf32>
    %99 = arith.negf %98 : vector<2x128xf32>
    %100 = math.exp %99 : vector<2x128xf32>
    %cst_45 = arith.constant 1.000000e+00 : f32
    %101 = vector.broadcast %cst_45 : f32 to vector<2x128xf32>
    %102 = arith.addf %101, %100 : vector<2x128xf32>
    %103 = arith.divf %101, %102 : vector<2x128xf32>
    %104 = arith.mulf %95, %72 : vector<2x128xf32>
    %105 = arith.mulf %89, %97 : vector<2x128xf32>
    %106 = arith.addf %104, %105 : vector<2x128xf32>
    %107 = math.tanh %106 : vector<2x128xf32>
    %108 = arith.mulf %103, %107 : vector<2x128xf32>
    %c0_46 = arith.constant 0 : index
    %c0_47 = arith.constant 0 : index
    %c0_48 = arith.constant 0 : index
    %109 = vector.load %arg12[%c0_46, %c0_47, %c0_48] : memref<2x2x256xf32, #tpu.memory_space<vmem>>, vector<1x2x128xf32>
    %110 = vector.shape_cast %109 : vector<1x2x128xf32> to vector<2x128xf32>
    %111 = vector.shape_cast %108 : vector<2x128xf32> to vector<1x2x128xf32>
    tpu.vector_store %arg12[%c0_46, %c0_47, %c0_48], %111 {strides = array<i32>} : memref<2x2x256xf32, #tpu.memory_space<vmem>>, vector<1x2x128xf32>,
    %c0_49 = arith.constant 0 : index
    %c0_50 = arith.constant 0 : index
    %c128_51 = arith.constant 128 : index
    %112 = vector.load %arg12[%c0_49, %c0_50, %c128_51] : memref<2x2x256xf32, #tpu.memory_space<vmem>>, vector<1x2x128xf32>
    %113 = vector.shape_cast %112 : vector<1x2x128xf32> to vector<2x128xf32>
    %114 = vector.shape_cast %106 : vector<2x128xf32> to vector<1x2x128xf32>
    tpu.vector_store %arg12[%c0_49, %c0_50, %c128_51], %114 {strides = array<i32>} : memref<2x2x256xf32, #tpu.memory_space<vmem>>, vector<1x2x128xf32>,
    %c1_52 = arith.constant 1 : index
    %c0_53 = arith.constant 0 : index
    %c0_54 = arith.constant 0 : index
    %115 = vector.load %arg2[%c1_52, %c0_53, %c0_54] : memref<2x2x128xf32, #tpu.memory_space<vmem>>, vector<1x2x128xf32>
    %116 = vector.shape_cast %115 : vector<1x2x128xf32> to vector<2x128xf32>
    %c1_55 = arith.constant 1 : index
    %c0_56 = arith.constant 0 : index
    %c0_57 = arith.constant 0 : index
    %117 = vector.load %arg3[%c1_55, %c0_56, %c0_57] : memref<2x2x128xf32, #tpu.memory_space<vmem>>, vector<1x2x128xf32>
    %118 = vector.shape_cast %117 : vector<1x2x128xf32> to vector<2x128xf32>
    %c1_58 = arith.constant 1 : index
    %c0_59 = arith.constant 0 : index
    %119 = vector.load %arg10[%c1_58, %c0_59] : memref<2x512xf32, #tpu.memory_space<vmem>>, vector<1x512xf32>
    %c264 = arith.constant 264 : index
    %c0_60 = arith.constant 0 : index
    %120 = vector.load %arg9[%c264, %c0_60] : memref<520x512xf32, #tpu.memory_space<vmem>>, vector<128x512xf32>
    %cst_61 = arith.constant dense<0.000000e+00> : vector<2x512xf32>
    %121 = tpu.matmul %108, %120, %cst_61 {dimension_numbers = #tpu.dot_dimension_numbers<[1], [0], [0], [1], [0, 0, 1, 1], [], []>} : vector<2x128xf32>, vector<128x512xf32>, vector<2x512xf32> -> vector<2x512xf32>
    %c392 = arith.constant 392 : index
    %c0_62 = arith.constant 0 : index
    %122 = vector.load %arg9[%c392, %c0_62] : memref<520x512xf32, #tpu.memory_space<vmem>>, vector<128x512xf32>
    %cst_63 = arith.constant dense<0.000000e+00> : vector<2x512xf32>
    %123 = tpu.matmul %116, %122, %cst_63 {dimension_numbers = #tpu.dot_dimension_numbers<[1], [0], [0], [1], [0, 0, 1, 1], [], []>} : vector<2x128xf32>, vector<128x512xf32>, vector<2x512xf32> -> vector<2x512xf32>
    %124 = arith.addf %121, %123 : vector<2x512xf32>
    %125 = vector.broadcast %119 : vector<1x512xf32> to vector<2x512xf32>
    %126 = arith.addf %124, %125 : vector<2x512xf32>
    %127 = vector.extract_strided_slice %126 {offsets = [0, 0], sizes = [2, 128], strides = [1, 1]} : vector<2x512xf32> to vector<2x128xf32>
    %128 = arith.negf %127 : vector<2x128xf32>
    %129 = math.exp %128 : vector<2x128xf32>
    %cst_64 = arith.constant 1.000000e+00 : f32
    %130 = vector.broadcast %cst_64 : f32 to vector<2x128xf32>
    %131 = arith.addf %130, %129 : vector<2x128xf32>
    %132 = arith.divf %130, %131 : vector<2x128xf32>
    %133 = vector.extract_strided_slice %126 {offsets = [0, 128], sizes = [2, 128], strides = [1, 1]} : vector<2x512xf32> to vector<2x128xf32>
    %134 = arith.negf %133 : vector<2x128xf32>
    %135 = math.exp %134 : vector<2x128xf32>
    %cst_65 = arith.constant 1.000000e+00 : f32
    %136 = vector.broadcast %cst_65 : f32 to vector<2x128xf32>
    %137 = arith.addf %136, %135 : vector<2x128xf32>
    %138 = arith.divf %136, %137 : vector<2x128xf32>
    %139 = vector.extract_strided_slice %126 {offsets = [0, 256], sizes = [2, 128], strides = [1, 1]} : vector<2x512xf32> to vector<2x128xf32>
    %140 = math.tanh %139 : vector<2x128xf32>
    %141 = vector.extract_strided_slice %126 {offsets = [0, 384], sizes = [2, 128], strides = [1, 1]} : vector<2x512xf32> to vector<2x128xf32>
    %142 = arith.negf %141 : vector<2x128xf32>
    %143 = math.exp %142 : vector<2x128xf32>
    %cst_66 = arith.constant 1.000000e+00 : f32
    %144 = vector.broadcast %cst_66 : f32 to vector<2x128xf32>
    %145 = arith.addf %144, %143 : vector<2x128xf32>
    %146 = arith.divf %144, %145 : vector<2x128xf32>
    %147 = arith.mulf %138, %118 : vector<2x128xf32>
    %148 = arith.mulf %132, %140 : vector<2x128xf32>
    %149 = arith.addf %147, %148 : vector<2x128xf32>
    %150 = math.tanh %149 : vector<2x128xf32>
    %151 = arith.mulf %146, %150 : vector<2x128xf32>
    %c1_67 = arith.constant 1 : index
    %c0_68 = arith.constant 0 : index
    %c0_69 = arith.constant 0 : index
    %152 = vector.load %arg12[%c1_67, %c0_68, %c0_69] : memref<2x2x256xf32, #tpu.memory_space<vmem>>, vector<1x2x128xf32>
    %153 = vector.shape_cast %152 : vector<1x2x128xf32> to vector<2x128xf32>
    %154 = vector.shape_cast %151 : vector<2x128xf32> to vector<1x2x128xf32>
    tpu.vector_store %arg12[%c1_67, %c0_68, %c0_69], %154 {strides = array<i32>} : memref<2x2x256xf32, #tpu.memory_space<vmem>>, vector<1x2x128xf32>,
    %c1_70 = arith.constant 1 : index
    %c0_71 = arith.constant 0 : index
    %c128_72 = arith.constant 128 : index
    %155 = vector.load %arg12[%c1_70, %c0_71, %c128_72] : memref<2x2x256xf32, #tpu.memory_space<vmem>>, vector<1x2x128xf32>
    %156 = vector.shape_cast %155 : vector<1x2x128xf32> to vector<2x128xf32>
    %157 = vector.shape_cast %149 : vector<2x128xf32> to vector<1x2x128xf32>
    tpu.vector_store %arg12[%c1_70, %c0_71, %c128_72], %157 {strides = array<i32>} : memref<2x2x256xf32, #tpu.memory_space<vmem>>, vector<1x2x128xf32>,
    %c0_73 = arith.constant 0 : index
    %c0_74 = arith.constant 0 : index
    %158 = vector.load %arg7[%c0_73, %c0_74] : memref<128x1xf32, #tpu.memory_space<vmem>>, vector<128x1xf32>
    %cst_75 = arith.constant dense<0.000000e+00> : vector<2x1xf32>
    %159 = tpu.matmul %151, %158, %cst_75 {dimension_numbers = #tpu.dot_dimension_numbers<[1], [0], [0], [1], [0, 0, 1, 1], [], []>} : vector<2x128xf32>, vector<128x1xf32>, vector<2x1xf32> -> vector<2x1xf32>
    %c0_76 = arith.constant 0 : index
    %c0_77 = arith.constant 0 : index
    %160 = vector.load %arg8[%c0_76, %c0_77] : memref<1x1xf32, #tpu.memory_space<vmem>>, vector<1x1xf32>
    %161 = vector.broadcast %160 : vector<1x1xf32> to vector<2x1xf32>
    %162 = arith.addf %159, %161 : vector<2x1xf32>
    %c0_78 = arith.constant 0 : index
    %c0_79 = arith.constant 0 : index
    %163 = vector.load %arg11[%c0_78, %c0_79] : memref<2x1xf32, #tpu.memory_space<vmem>>, vector<2x1xf32>
    tpu.vector_store %arg11[%c0_78, %c0_79], %162 {strides = array<i32>} : memref<2x1xf32, #tpu.memory_space<vmem>>, vector<2x1xf32>,
    return
  }
}

</mosaic_0001>

<llo_original>
// kernel: tpu_custom_call.1
$region0: #{tpu_custom_call.1}
  #allocation0 [shape = 'u32[]', space=smem, size = 0x4, offset = 0x4, fixed_abs, tag = 'smem constant byte address 0x4 - core index']
  #allocation1 [shape = 'u32[72,128]{1,0:T(1,128)}', space=vmem, size = 0x9000, scoped, tag = 'internal scratch']
  #allocation2 [shape = 'f32[1,1]{1,0:T(1,128)S(1)}', space=vmem, size = 0x200, scoped, tag = 'scoped memory for tpu_custom_call.1']
  %s0 = inlined_call_operand.hbm [shape: f32[16,64], index: 0, kind: input, shape index: {}]
  %s1 = inlined_call_operand.hbm [shape: f32[2,8], index: 1, kind: input, shape index: {}]
  %s2 = inlined_call_operand.hbm [shape: f32[2,2,128], index: 2, kind: input, shape index: {}]
  %s3 = inlined_call_operand.hbm [shape: f32[2,2,128], index: 3, kind: input, shape index: {}]
  %s4 = inlined_call_operand.hbm [shape: f32[320,128], index: 4, kind: input, shape index: {}]
  %s5 = inlined_call_operand.hbm [shape: f32[2,128], index: 5, kind: input, shape index: {}]
  %s6 = inlined_call_operand.hbm [shape: f32[129,128], index: 6, kind: input, shape index: {}]
  %s7 = inlined_call_operand.vmem [shape: f32[128,1], index: 7, kind: input, shape index: {}]
  %s8 = inlined_call_operand.<no memory space> [shape: f32[1,1], index: 8, kind: input, shape index: {}]
  %s9 = inlined_call_operand.hbm [shape: f32[520,512], index: 9, kind: input, shape index: {}]
  %s10 = inlined_call_operand.hbm [shape: f32[2,512], index: 10, kind: input, shape index: {}]
  %s11 = inlined_call_operand.vmem [shape: f32[2,1], index: 11, kind: output, shape index: {0}]
  %s12 = inlined_call_operand.hbm [shape: f32[2,2,256], index: 12, kind: output, shape index: {1}]
  %13 = xla_tuple %s11, %s12
  %s14 = sld [smem:[#allocation0]]
  $region98: #{tpu_custom_call.1} parent=0
    _
  %s16 = ssub.s32 1, %s14
  %s17 = scalar_select 0, %s16, %s14
  %v18 = vstv %s8
  %19 = vst [vmem:[#allocation2] sm:$0x1] %v18
  $region1: #{tpu_custom_call.1} parent=0
    #allocation3 [shape = 'u8[8192]{0}', space=vmem, size = 0x2000, scoped, tag = 'input window, operand 0, single buffered']
    #allocation4 [shape = 's32[1]{0}', space=sflag, size = 0x4, scoped, tag = 'scoped memory for tpu_custom_call.1']
    #allocation5 [shape = 's32[1]{0}', space=sflag, size = 0x4, scoped, tag = 'scoped memory for tpu_custom_call.1']
    #allocation6 [shape = 'u8[1024]{0}', space=vmem, size = 0x400, scoped, tag = 'input window, operand 1, single buffered']
    #allocation7 [shape = 's32[1]{0}', space=sflag, size = 0x4, scoped, tag = 'scoped memory for tpu_custom_call.1']
    #allocation8 [shape = 'u8[2048]{0}', space=vmem, size = 0x800, scoped, tag = 'input window, operand 2, single buffered']
    #allocation9 [shape = 'u8[2048]{0}', space=vmem, size = 0x800, scoped, tag = 'input window, operand 3, single buffered']
    #allocation10 [shape = 's32[1]{0}', space=sflag, size = 0x4, scoped, tag = 'scoped memory for tpu_custom_call.1']
    #allocation11 [shape = 'u8[163840]{0}', space=vmem, size = 0x28000, scoped, tag = 'input window, operand 4, single buffered']
    #allocation12 [shape = 'u8[1024]{0}', space=vmem, size = 0x400, scoped, tag = 'input window, operand 5, single buffered']
    #allocation13 [shape = 's32[1]{0}', space=sflag, size = 0x4, scoped, tag = 'scoped memory for tpu_custom_call.1']
    #allocation14 [shape = 'u8[69632]{0}', space=vmem, size = 0x11000, scoped, tag = 'input window, operand 6, single buffered']
    #allocation15 [shape = 'u8[1064960]{0}', space=vmem, size = 0x104000, scoped, tag = 'input window, operand 9, single buffered']
    #allocation16 [shape = 's32[1]{0}', space=sflag, size = 0x4, scoped, tag = 'scoped memory for tpu_custom_call.1']
    #allocation17 [shape = 'u8[4096]{0}', space=vmem, size = 0x1000, scoped, tag = 'input window, operand 10, single buffered']
    #allocation18 [shape = 'u8[4096]{0}', space=vmem, size = 0x1000, scoped, tag = 'output window, operand 1, single buffered']
    %20 = vsyncpa [#allocation4], 0
    %21 = vsyncpa [#allocation7], 0
    %22 = vsyncpa [#allocation10], 0
    %23 = vsyncpa [#allocation13], 0
    %24 = vsyncpa [#allocation16], 0
    %25 = vsyncpa [#allocation5], 0
    // Predicated region
    $region2: #{tpu_custom_call.1} parent=1 // pred_check
      _
    $region3: #{tpu_custom_call.1} parent=1 // pred_check_branch
      %27 = sbr.rel (0) target = $region5
    $region4: #{tpu_custom_call.1} parent=1 // pred_region
      %29 = vsyncadd [#allocation4], 0
      %s30 = sshll.u32 %s0, 4
      %s31 = int_to_ptr.hbm [resolvable:$true] %s30
      %s32 = sshll.u32 [#allocation3], 4
      %s33 = int_to_ptr.vmem [resolvable:$true] %s32
      %38 = dma.hbm_to_vmem [thread:$0]  %s31, 256, %s33, [#allocation4], 128, 128, 8
    $region5: #{tpu_custom_call.1} parent=1 // pred_fallthru
      _
    // Predicated region
    $region6: #{tpu_custom_call.1} parent=1 // pred_check
      _
    $region7: #{tpu_custom_call.1} parent=1 // pred_check_branch
      %40 = sbr.rel (0) target = $region9
    $region8: #{tpu_custom_call.1} parent=1 // pred_region
      %42 = vsyncadd [#allocation7], 0
      %s44 = sshll.u32 %s1, 4
      %s45 = int_to_ptr.hbm [resolvable:$true] %s44
      %s46 = sshll.u32 [#allocation6], 4
      %s47 = int_to_ptr.vmem [resolvable:$true] %s46
      %49 = dma.hbm_to_vmem [thread:$0]  %s45, 32, %s47, [#allocation7]
    $region9: #{tpu_custom_call.1} parent=1 // pred_fallthru
      _
    // Predicated region
    $region10: #{tpu_custom_call.1} parent=1 // pred_check
      _
    $region11: #{tpu_custom_call.1} parent=1 // pred_check_branch
      %51 = sbr.rel (0) target = $region13
    $region12: #{tpu_custom_call.1} parent=1 // pred_region
      %53 = vsyncadd [#allocation7], 0
      %s54 = sshll.u32 %s2, 4
      %s55 = int_to_ptr.hbm [resolvable:$true] %s54
      %s56 = sshll.u32 [#allocation8], 4
      %s57 = int_to_ptr.vmem [resolvable:$true] %s56
      %62 = dma.hbm_to_vmem [thread:$0]  %s55, 64, %s57, [#allocation7], 32, 32, 2
    $region13: #{tpu_custom_call.1} parent=1 // pred_fallthru
      _
    // Predicated region
    $region14: #{tpu_custom_call.1} parent=1 // pred_check
      _
    $region15: #{tpu_custom_call.1} parent=1 // pred_check_branch
      %64 = sbr.rel (0) target = $region17
    $region16: #{tpu_custom_call.1} parent=1 // pred_region
      %66 = vsyncadd [#allocation10], 0
      %s67 = sshll.u32 %s3, 4
      %s68 = int_to_ptr.hbm [resolvable:$true] %s67
      %s69 = sshll.u32 [#allocation9], 4
      %s70 = int_to_ptr.vmem [resolvable:$true] %s69
      %75 = dma.hbm_to_vmem [thread:$0]  %s68, 64, %s70, [#allocation10], 32, 32, 2
    $region17: #{tpu_custom_call.1} parent=1 // pred_fallthru
      _
    // Predicated region
    $region18: #{tpu_custom_call.1} parent=1 // pred_check
      _
    $region19: #{tpu_custom_call.1} parent=1 // pred_check_branch
      %77 = sbr.rel (0) target = $region21
    $region20: #{tpu_custom_call.1} parent=1 // pred_region
      %79 = vsyncadd [#allocation10], 0
      %s80 = sshll.u32 %s4, 4
      %s81 = int_to_ptr.hbm [resolvable:$true] %s80
      %s82 = sshll.u32 [#allocation11], 4
      %s83 = int_to_ptr.vmem [resolvable:$true] %s82
      %88 = dma.hbm_to_vmem [thread:$0]  %s81, 5120, %s83, [#allocation10], 128, 128, 8
    $region21: #{tpu_custom_call.1} parent=1 // pred_fallthru
      _
    // Predicated region
    $region22: #{tpu_custom_call.1} parent=1 // pred_check
      _
    $region23: #{tpu_custom_call.1} parent=1 // pred_check_branch
      %90 = sbr.rel (0) target = $region25
    $region24: #{tpu_custom_call.1} parent=1 // pred_region
      %92 = vsyncadd [#allocation13], 0
      %s94 = sshll.u32 %s5, 4
      %s95 = int_to_ptr.hbm [resolvable:$true] %s94
      %s96 = sshll.u32 [#allocation12], 4
      %s97 = int_to_ptr.vmem [resolvable:$true] %s96
      %99 = dma.hbm_to_vmem [thread:$0]  %s95, 32, %s97, [#allocation13]
    $region25: #{tpu_custom_call.1} parent=1 // pred_fallthru
      _
    // Predicated region
    $region26: #{tpu_custom_call.1} parent=1 // pred_check
      _
    $region27: #{tpu_custom_call.1} parent=1 // pred_check_branch
      %101 = sbr.rel (0) target = $region29
    $region28: #{tpu_custom_call.1} parent=1 // pred_region
      %103 = vsyncadd [#allocation13], 0
      %s104 = sshll.u32 %s6, 4
      %s105 = int_to_ptr.hbm [resolvable:$true] %s104
      %s106 = sshll.u32 [#allocation14], 4
      %s107 = int_to_ptr.vmem [resolvable:$true] %s106
      %112 = dma.hbm_to_vmem [thread:$0]  %s105, 2176, %s107, [#allocation13], 128, 128, 8
    $region29: #{tpu_custom_call.1} parent=1 // pred_fallthru
      _
    // Predicated region
    $region30: #{tpu_custom_call.1} parent=1 // pred_check
      _
    $region31: #{tpu_custom_call.1} parent=1 // pred_check_branch
      %114 = sbr.rel (0) target = $region33
    $region32: #{tpu_custom_call.1} parent=1 // pred_region
      _
    $region33: #{tpu_custom_call.1} parent=1 // pred_fallthru
      _
    // Predicated region
    $region34: #{tpu_custom_call.1} parent=1 // pred_check
      _
    $region35: #{tpu_custom_call.1} parent=1 // pred_check_branch
      %116 = sbr.rel (0) target = $region37
    $region36: #{tpu_custom_call.1} parent=1 // pred_region
      _
    $region37: #{tpu_custom_call.1} parent=1 // pred_fallthru
      _
    // Predicated region
    $region38: #{tpu_custom_call.1} parent=1 // pred_check
      _
    $region39: #{tpu_custom_call.1} parent=1 // pred_check_branch
      %118 = sbr.rel (0) target = $region41
    $region40: #{tpu_custom_call.1} parent=1 // pred_region
      %120 = vsyncadd [#allocation16], 0
      %s121 = sshll.u32 %s9, 4
      %s122 = int_to_ptr.hbm [resolvable:$true] %s121
      %s123 = sshll.u32 [#allocation15], 4
      %s124 = int_to_ptr.vmem [resolvable:$true] %s123
      %129 = dma.hbm_to_vmem [thread:$0]  %s122, 33280, %s124, [#allocation16], 512, 512, 32
    $region41: #{tpu_custom_call.1} parent=1 // pred_fallthru
      _
    // Predicated region
    $region42: #{tpu_custom_call.1} parent=1 // pred_check
      _
    $region43: #{tpu_custom_call.1} parent=1 // pred_check_branch
      %131 = sbr.rel (0) target = $region45
    $region44: #{tpu_custom_call.1} parent=1 // pred_region
      %133 = vsyncadd [#allocation16], 0
      %s135 = sshll.u32 %s10, 4
      %s136 = int_to_ptr.hbm [resolvable:$true] %s135
      %s137 = sshll.u32 [#allocation17], 4
      %s138 = int_to_ptr.vmem [resolvable:$true] %s137
      %140 = dma.hbm_to_vmem [thread:$0]  %s136, 128, %s138, [#allocation16]
    $region45: #{tpu_custom_call.1} parent=1 // pred_fallthru
      _
    // Predicated region
    $region46: #{tpu_custom_call.1} parent=1 // pred_check
      _
    $region47: #{tpu_custom_call.1} parent=1 // pred_check_branch
      %142 = sbr.rel (0) target = $region49
    $region48: #{tpu_custom_call.1} parent=1 // pred_region
      %144 = dma.done [#allocation4], 256
    $region49: #{tpu_custom_call.1} parent=1 // pred_fallthru
      _
    // Predicated region
    $region50: #{tpu_custom_call.1} parent=1 // pred_check
      _
    $region51: #{tpu_custom_call.1} parent=1 // pred_check_branch
      %146 = sbr.rel (0) target = $region53
    $region52: #{tpu_custom_call.1} parent=1 // pred_region
      %148 = dma.done [#allocation7], 32
    $region53: #{tpu_custom_call.1} parent=1 // pred_fallthru
      _
    // Predicated region
    $region54: #{tpu_custom_call.1} parent=1 // pred_check
      _
    $region55: #{tpu_custom_call.1} parent=1 // pred_check_branch
      %150 = sbr.rel (0) target = $region57
    $region56: #{tpu_custom_call.1} parent=1 // pred_region
      %152 = dma.done [#allocation7], 64
    $region57: #{tpu_custom_call.1} parent=1 // pred_fallthru
      _
    // Predicated region
    $region58: #{tpu_custom_call.1} parent=1 // pred_check
      _
    $region59: #{tpu_custom_call.1} parent=1 // pred_check_branch
      %154 = sbr.rel (0) target = $region61
    $region60: #{tpu_custom_call.1} parent=1 // pred_region
      %156 = dma.done [#allocation10], 64
    $region61: #{tpu_custom_call.1} parent=1 // pred_fallthru
      _
    // Predicated region
    $region62: #{tpu_custom_call.1} parent=1 // pred_check
      _
    $region63: #{tpu_custom_call.1} parent=1 // pred_check_branch
      %158 = sbr.rel (0) target = $region65
    $region64: #{tpu_custom_call.1} parent=1 // pred_region
      %160 = dma.done [#allocation10], 5120
    $region65: #{tpu_custom_call.1} parent=1 // pred_fallthru
      _
    // Predicated region
    $region66: #{tpu_custom_call.1} parent=1 // pred_check
      _
    $region67: #{tpu_custom_call.1} parent=1 // pred_check_branch
      %162 = sbr.rel (0) target = $region69
    $region68: #{tpu_custom_call.1} parent=1 // pred_region
      %164 = dma.done [#allocation13], 32
    $region69: #{tpu_custom_call.1} parent=1 // pred_fallthru
      _
    // Predicated region
    $region70: #{tpu_custom_call.1} parent=1 // pred_check
      _
    $region71: #{tpu_custom_call.1} parent=1 // pred_check_branch
      %166 = sbr.rel (0) target = $region73
    $region72: #{tpu_custom_call.1} parent=1 // pred_region
      %168 = dma.done [#allocation13], 2176
    $region73: #{tpu_custom_call.1} parent=1 // pred_fallthru
      _
    // Predicated region
    $region74: #{tpu_custom_call.1} parent=1 // pred_check
      _
    $region75: #{tpu_custom_call.1} parent=1 // pred_check_branch
      %170 = sbr.rel (0) target = $region77
    $region76: #{tpu_custom_call.1} parent=1 // pred_region
      %172 = dma.done [#allocation16], 33280
    $region77: #{tpu_custom_call.1} parent=1 // pred_fallthru
      _
    // Predicated region
    $region78: #{tpu_custom_call.1} parent=1 // pred_check
      _
    $region79: #{tpu_custom_call.1} parent=1 // pred_check_branch
      %174 = sbr.rel (0) target = $region81
    $region80: #{tpu_custom_call.1} parent=1 // pred_region
      %176 = dma.done [#allocation16], 128
    $region81: #{tpu_custom_call.1} parent=1 // pred_fallthru
      _
    %v177 = vld [vmem:[#allocation11] sm:$0xff]
    %v178 = vld [vmem:[#allocation11 + $0x8] sm:$0xff]
    %v179 = vld [vmem:[#allocation11 + $0x10] sm:$0xff]
    %v180 = vld [vmem:[#allocation11 + $0x18] sm:$0xff]
    %v181 = vld [vmem:[#allocation11 + $0x20] sm:$0xff]
    %v182 = vld [vmem:[#allocation11 + $0x28] sm:$0xff]
    %v183 = vld [vmem:[#allocation11 + $0x30] sm:$0xff]
    %v184 = vld [vmem:[#allocation11 + $0x38] sm:$0xff]
    %v185 = vld [vmem:[#allocation11 + $0x40] sm:$0xff]
    %v186 = vld [vmem:[#allocation11 + $0x48] sm:$0xff]
    %v187 = vld [vmem:[#allocation11 + $0x50] sm:$0xff]
    %v188 = vld [vmem:[#allocation11 + $0x58] sm:$0xff]
    %v189 = vld [vmem:[#allocation11 + $0x60] sm:$0xff]
    %v190 = vld [vmem:[#allocation11 + $0x68] sm:$0xff]
    %v191 = vld [vmem:[#allocation11 + $0x70] sm:$0xff]
    %v192 = vld [vmem:[#allocation11 + $0x78] sm:$0xff]
    %v193 = vld [vmem:[#allocation11 + $0x80] sm:$0xff]
    %v194 = vld [vmem:[#allocation11 + $0x88] sm:$0xff]
    %v195 = vld [vmem:[#allocation11 + $0x90] sm:$0xff]
    %v196 = vld [vmem:[#allocation11 + $0x98] sm:$0xff]
    %v197 = vld [vmem:[#allocation11 + $0xa0] sm:$0xff]
    %v198 = vld [vmem:[#allocation11 + $0xa8] sm:$0xff]
    %v199 = vld [vmem:[#allocation11 + $0xb0] sm:$0xff]
    %v200 = vld [vmem:[#allocation11 + $0xb8] sm:$0xff]
    %v201 = vld [vmem:[#allocation11 + $0xc0] sm:$0xff]
    %v202 = vld [vmem:[#allocation11 + $0xc8] sm:$0xff]
    %v203 = vld [vmem:[#allocation11 + $0xd0] sm:$0xff]
    %v204 = vld [vmem:[#allocation11 + $0xd8] sm:$0xff]
    %v205 = vld [vmem:[#allocation11 + $0xe0] sm:$0xff]
    %v206 = vld [vmem:[#allocation11 + $0xe8] sm:$0xff]
    %v207 = vld [vmem:[#allocation11 + $0xf0] sm:$0xff]
    %v208 = vld [vmem:[#allocation11 + $0xf8] sm:$0xff]
    %v209 = vld [vmem:[#allocation11 + $0x100] sm:$0xff]
    %v210 = vld [vmem:[#allocation11 + $0x108] sm:$0xff]
    %v211 = vld [vmem:[#allocation11 + $0x110] sm:$0xff]
    %v212 = vld [vmem:[#allocation11 + $0x118] sm:$0xff]
    %v213 = vld [vmem:[#allocation11 + $0x120] sm:$0xff]
    %v214 = vld [vmem:[#allocation11 + $0x128] sm:$0xff]
    %v215 = vld [vmem:[#allocation11 + $0x130] sm:$0xff]
    %v216 = vld [vmem:[#allocation11 + $0x138] sm:$0xff]
    %v217 = vld [vmem:[#allocation12] sm:$0x1]
    %v218 = vld [vmem:[#allocation12 + $0x1] sm:$0x1]
    %v219 = vld [vmem:[#allocation14] sm:$0xff]
    %v220 = vld [vmem:[#allocation14 + $0x8] sm:$0xff]
    %v221 = vld [vmem:[#allocation14 + $0x10] sm:$0xff]
    %v222 = vld [vmem:[#allocation14 + $0x18] sm:$0xff]
    %v223 = vld [vmem:[#allocation14 + $0x20] sm:$0xff]
    %v224 = vld [vmem:[#allocation14 + $0x28] sm:$0xff]
    %v225 = vld [vmem:[#allocation14 + $0x30] sm:$0xff]
    %v226 = vld [vmem:[#allocation14 + $0x38] sm:$0xff]
    %v227 = vld [vmem:[#allocation14 + $0x40] sm:$0xff]
    %v228 = vld [vmem:[#allocation14 + $0x48] sm:$0xff]
    %v229 = vld [vmem:[#allocation14 + $0x50] sm:$0xff]
    %v230 = vld [vmem:[#allocation14 + $0x58] sm:$0xff]
    %v231 = vld [vmem:[#allocation14 + $0x60] sm:$0xff]
    %v232 = vld [vmem:[#allocation14 + $0x68] sm:$0xff]
    %v233 = vld [vmem:[#allocation14 + $0x70] sm:$0xff]
    %v234 = vld [vmem:[#allocation14 + $0x78] sm:$0xff]
    %v235 = vld [vmem:[#allocation14 + $0x80] sm:$0x1]
    %v236 = vld [vmem:[#allocation3] sm:$0xff]
    %v237 = vld [vmem:[#allocation3 + $0x8] sm:$0xff]
    %v238 = vperm.slane %v217, 0
    %vm239 = vcmask 523264
    %v241 = vsel %vm239, %v236, 0
    %v244 = vsel %vm239, %v237, 0
    %246 = vmatpush.msra.mxu0 0.0
    %247 = vmatpush.msra.mxu0 0.0
    %248 = vmatpush.msra.mxu0 0.0
    %249 = vmatpush.msra.mxu0 0.0
    %250 = vmatpush.msra.mxu0 0.0
    %251 = vmatpush.msra.mxu0 0.0
    %252 = vmatpush.msra.mxu0 0.0
    %253 = vmatpush.msra.mxu0 0.0
    %254 = vmatpush.msra.mxu0 %v184
    %255 = vmatpush.msra.mxu0 %v183
    %256 = vmatpush.msra.mxu0 %v182
    %257 = vmatpush.msra.mxu0 %v181
    %258 = vmatpush.msra.mxu0 %v180
    %259 = vmatpush.msra.mxu0 %v179
    %260 = vmatpush.msra.mxu0 %v178
    %261 = vmatpush.msra.mxu0 %v177
    %262 = vmatmul.f32.gmra.mxu0 %v241
    %v263 = vpop.f32.mrf.mxu0
    %v264 = vadd.f32 %v238, %v263
    %265 = vmatmul.f32.gmra.mxu0 %v244
    %v266 = vpop.f32.mrf.mxu0
    %v267 = vadd.f32 %v238, %v266
    %268 = vdwg.mxu0
    %s269 = scalar_lea.vmem [#allocation8], 2
    %v270 = vld [vmem:[%s269] sm:$0x3]
    %v271 = vperm.slane %v218, 0
    %272 = vmatpush.msra.mxu0 %v216
    %273 = vmatpush.msra.mxu0 %v215
    %274 = vmatpush.msra.mxu0 %v214
    %275 = vmatpush.msra.mxu0 %v213
    %276 = vmatpush.msra.mxu0 %v212
    %277 = vmatpush.msra.mxu0 %v211
    %278 = vmatpush.msra.mxu0 %v210
    %279 = vmatpush.msra.mxu0 %v209
    %280 = vmatpush.msra.mxu0 %v208
    %281 = vmatpush.msra.mxu0 %v207
    %282 = vmatpush.msra.mxu0 %v206
    %283 = vmatpush.msra.mxu0 %v205
    %284 = vmatpush.msra.mxu0 %v204
    %285 = vmatpush.msra.mxu0 %v203
    %286 = vmatpush.msra.mxu0 %v202
    %287 = vmatpush.msra.mxu0 %v201
    %288 = vmatmul.f32.gmra.mxu0 %v270
    %v289 = vpop.f32.mrf.mxu0
    %v290 = vadd.f32 %v271, %v289
    %291 = vdwg.mxu0
    %292 = vmatpush.msra.mxu0 %v200
    %293 = vmatpush.msra.mxu0 %v199
    %294 = vmatpush.msra.mxu0 %v198
    %295 = vmatpush.msra.mxu0 %v197
    %296 = vmatpush.msra.mxu0 %v196
    %297 = vmatpush.msra.mxu0 %v195
    %298 = vmatpush.msra.mxu0 %v194
    %299 = vmatpush.msra.mxu0 %v193
    %300 = vmatpush.msra.mxu0 %v192
    %301 = vmatpush.msra.mxu0 %v191
    %302 = vmatpush.msra.mxu0 %v190
    %303 = vmatpush.msra.mxu0 %v189
    %304 = vmatpush.msra.mxu0 %v188
    %305 = vmatpush.msra.mxu0 %v187
    %306 = vmatpush.msra.mxu0 %v186
    %307 = vmatpush.msra.mxu0 %v185
    %308 = vmatmul.f32.gmra.mxu0 %v264
    %v309 = vpop.f32.mrf.mxu0
    %v310 = vadd.f32 0.0, %v309
    %311 = vmatmul.f32.gmra.mxu0 %v267
    %v312 = vpop.f32.mrf.mxu0
    %v313 = vadd.f32 0.0, %v312
    %314 = vdwg.mxu0
    %315 = vmatpush.msra.mxu0 %v234
    %316 = vmatpush.msra.mxu0 %v233
    %317 = vmatpush.msra.mxu0 %v232
    %318 = vmatpush.msra.mxu0 %v231
    %319 = vmatpush.msra.mxu0 %v230
    %320 = vmatpush.msra.mxu0 %v229
    %321 = vmatpush.msra.mxu0 %v228
    %322 = vmatpush.msra.mxu0 %v227
    %323 = vmatpush.msra.mxu0 %v226
    %324 = vmatpush.msra.mxu0 %v225
    %325 = vmatpush.msra.mxu0 %v224
    %326 = vmatpush.msra.mxu0 %v223
    %327 = vmatpush.msra.mxu0 %v222
    %328 = vmatpush.msra.mxu0 %v221
    %329 = vmatpush.msra.mxu0 %v220
    %330 = vmatpush.msra.mxu0 %v219
    %331 = vmatmul.f32.gmra.mxu0 %v310
    %v332 = vpop.f32.mrf.mxu0
    %v333 = vadd.f32 0.0, %v332
    %334 = vmatmul.f32.gmra.mxu0 %v313
    %v335 = vpop.f32.mrf.mxu0
    %v336 = vadd.f32 0.0, %v335
    %337 = vdwg.mxu0
    %338 = vmatpush.msra.mxu0 %v234
    %339 = vmatpush.msra.mxu0 %v233
    %340 = vmatpush.msra.mxu0 %v232
    %341 = vmatpush.msra.mxu0 %v231
    %342 = vmatpush.msra.mxu0 %v230
    %343 = vmatpush.msra.mxu0 %v229
    %344 = vmatpush.msra.mxu0 %v228
    %345 = vmatpush.msra.mxu0 %v227
    %346 = vmatpush.msra.mxu0 %v226
    %347 = vmatpush.msra.mxu0 %v225
    %348 = vmatpush.msra.mxu0 %v224
    %349 = vmatpush.msra.mxu0 %v223
    %350 = vmatpush.msra.mxu0 %v222
    %351 = vmatpush.msra.mxu0 %v221
    %352 = vmatpush.msra.mxu0 %v220
    %353 = vmatpush.msra.mxu0 %v219
    %354 = vmatmul.f32.gmra.mxu0 %v290
    %v355 = vpop.f32.mrf.mxu0
    %v356 = vadd.f32 0.0, %v355
    %357 = vdwg.mxu0
    %v358 = vperm.slane %v356, 0
    %v359 = vadd.f32 %v333, %v358
    %v360 = vtanh.pop %v359
    %v361 = vperm.slane %v235, 0
    %v362 = vmul.f32 %v360, %v361
    %363 = vadd.xlane.f32.xlu0 %v362
    %v364 = vpop.xlane.xlu0 %363
    %v365 = vrot.slane %v364, 4
    %v366 = vmax.f32 %v364, %v365
    %v367 = vrot.slane %v366, 2
    %v368 = vmax.f32 %v366, %v367
    %v369 = vrot.slane %v368, 1
    %v370 = vmax.f32 %v368, %v369
    %v371 = vsub.f32 %v364, %v370
    %v372 = vmul.f32 %v371, 1.442695
    %v373 = vpow.pop %v372
    %v374 = vrot.slane %v373, 4
    %v375 = vadd.f32 %v373, %v374
    %v376 = vrot.slane %v375, 2
    %v377 = vadd.f32 %v375, %v376
    %v378 = vrot.slane %v377, 1
    %v379 = vadd.f32 %v377, %v378
    %v380 = vmul.f32 %v373, %v264
    %v381 = vrot.slane %v380, 4
    %v382 = vadd.f32 %v380, %v381
    %v383 = vrot.slane %v382, 2
    %v384 = vadd.f32 %v382, %v383
    %v385 = vrot.slane %v384, 1
    %v386 = vadd.f32 %v384, %v385
    %v387 = vrcp.pop %v379
    %v388 = vmul.f32 %v379, %v387
    %v389 = vsub.f32 1.0, %v388
    %v390 = vmul.f32 %v387, %v389
    %v391 = vadd.f32 %v387, %v390
    %vm392 = vweird.f32 %v379
    %vm393 = vweird.f32 %v387
    %vm394 = vmor %vm392, %vm393
    %v395 = vsel %vm394, %v387, %v391
    %v396 = vand.u32 2147483647, %v379
    %vm397 = vcmp.eq.f32.partialorder %v396, 8.507059e+37
    %v398 = vand.u32 %v379, 2147483648
    %v399 = vor.u32 1.1754944e-38, %v398
    %v400 = vsel %vm397, %v399, %v395
    %v401 = vmul.f32 %v386, %v400
    %v402 = vperm.slane %v356, 1
    %v403 = vadd.f32 %v336, %v402
    %v404 = vtanh.pop %v403
    %v405 = vmul.f32 %v404, %v361
    %406 = vadd.xlane.f32.xlu0 %v405
    %v407 = vpop.xlane.xlu0 %406
    %v408 = vrot.slane %v407, 4
    %v409 = vmax.f32 %v407, %v408
    %v410 = vrot.slane %v409, 2
    %v411 = vmax.f32 %v409, %v410
    %v412 = vrot.slane %v411, 1
    %v413 = vmax.f32 %v411, %v412
    %v414 = vsub.f32 %v407, %v413
    %v415 = vmul.f32 %v414, 1.442695
    %v416 = vpow.pop %v415
    %v417 = vrot.slane %v416, 4
    %v418 = vadd.f32 %v416, %v417
    %v419 = vrot.slane %v418, 2
    %v420 = vadd.f32 %v418, %v419
    %v421 = vrot.slane %v420, 1
    %v422 = vadd.f32 %v420, %v421
    %v423 = vmul.f32 %v416, %v267
    %v424 = vrot.slane %v423, 4
    %v425 = vadd.f32 %v423, %v424
    %v426 = vrot.slane %v425, 2
    %v427 = vadd.f32 %v425, %v426
    %v428 = vrot.slane %v427, 1
    %v429 = vadd.f32 %v427, %v428
    %v430 = vrcp.pop %v422
    %v431 = vmul.f32 %v422, %v430
    %v432 = vsub.f32 1.0, %v431
    %v433 = vmul.f32 %v430, %v432
    %v434 = vadd.f32 %v430, %v433
    %vm435 = vweird.f32 %v422
    %vm436 = vweird.f32 %v430
    %vm437 = vmor %vm435, %vm436
    %v438 = vsel %vm437, %v430, %v434
    %v439 = vand.u32 2147483647, %v422
    %vm440 = vcmp.eq.f32.partialorder %v439, 8.507059e+37
    %v441 = vand.u32 %v422, 2147483648
    %v442 = vor.u32 1.1754944e-38, %v441
    %v443 = vsel %vm440, %v442, %v438
    %v444 = vmul.f32 %v429, %v443
    %vm445 = vcmask 1040384
    %v446 = vsel %vm445, %v401, %v444
    %v447 = vld [vmem:[#allocation6] sm:$0x3]
    %v448 = vld [vmem:[#allocation8] sm:$0x3]
    %v449 = vld [vmem:[#allocation9] sm:$0x3]
    %v450 = vld [vmem:[#allocation17] ss:$2 sm:$0xf]
    %v451 = vld [vmem:[#allocation15] sm:$0xff]
    %v452 = vld [vmem:[#allocation15 + $0x8] sm:$0xff]
    %v453 = vld [vmem:[#allocation15 + $0x10] sm:$0xff]
    %v454 = vld [vmem:[#allocation15 + $0x18] sm:$0xff]
    %v455 = vld [vmem:[#allocation15 + $0x20] sm:$0xff]
    %v456 = vld [vmem:[#allocation15 + $0x28] sm:$0xff]
    %v457 = vld [vmem:[#allocation15 + $0x30] sm:$0xff]
    %v458 = vld [vmem:[#allocation15 + $0x38] sm:$0xff]
    %v459 = vld [vmem:[#allocation15 + $0x40] sm:$0xff]
    %v460 = vld [vmem:[#allocation15 + $0x48] sm:$0xff]
    %v461 = vld [vmem:[#allocation15 + $0x50] sm:$0xff]
    %v462 = vld [vmem:[#allocation15 + $0x58] sm:$0xff]
    %v463 = vld [vmem:[#allocation15 + $0x60] sm:$0xff]
    %v464 = vld [vmem:[#allocation15 + $0x68] sm:$0xff]
    %v465 = vld [vmem:[#allocation15 + $0x70] sm:$0xff]
    %v466 = vld [vmem:[#allocation15 + $0x78] sm:$0xff]
    %v467 = vld [vmem:[#allocation15 + $0x80] sm:$0xff]
    %v468 = vld [vmem:[#allocation15 + $0x88] sm:$0xff]
    %v469 = vld [vmem:[#allocation15 + $0x90] sm:$0xff]
    %v470 = vld [vmem:[#allocation15 + $0x98] sm:$0xff]
    %v471 = vld [vmem:[#allocation15 + $0xa0] sm:$0xff]
    %v472 = vld [vmem:[#allocation15 + $0xa8] sm:$0xff]
    %v473 = vld [vmem:[#allocation15 + $0xb0] sm:$0xff]
    %v474 = vld [vmem:[#allocation15 + $0xb8] sm:$0xff]
    %v475 = vld [vmem:[#allocation15 + $0xc0] sm:$0xff]
    %v476 = vld [vmem:[#allocation15 + $0xc8] sm:$0xff]
    %v477 = vld [vmem:[#allocation15 + $0xd0] sm:$0xff]
    %v478 = vld [vmem:[#allocation15 + $0xd8] sm:$0xff]
    %v479 = vld [vmem:[#allocation15 + $0xe0] sm:$0xff]
    %v480 = vld [vmem:[#allocation15 + $0xe8] sm:$0xff]
    %v481 = vld [vmem:[#allocation15 + $0xf0] sm:$0xff]
    %v482 = vld [vmem:[#allocation15 + $0xf8] sm:$0xff]
    %v483 = vld [vmem:[#allocation15 + $0x100] sm:$0xff]
    %v484 = vld [vmem:[#allocation15 + $0x108] sm:$0xff]
    %v485 = vld [vmem:[#allocation15 + $0x110] sm:$0xff]
    %v486 = vld [vmem:[#allocation15 + $0x118] sm:$0xff]
    %v487 = vld [vmem:[#allocation15 + $0x120] sm:$0xff]
    %v488 = vld [vmem:[#allocation15 + $0x128] sm:$0xff]
    %v489 = vld [vmem:[#allocation15 + $0x130] sm:$0xff]
    %v490 = vld [vmem:[#allocation15 + $0x138] sm:$0xff]
    %v491 = vld [vmem:[#allocation15 + $0x140] sm:$0xff]
    %v492 = vld [vmem:[#allocation15 + $0x148] sm:$0xff]
    %v493 = vld [vmem:[#allocation15 + $0x150] sm:$0xff]
    %v494 = vld [vmem:[#allocation15 + $0x158] sm:$0xff]
    %v495 = vld [vmem:[#allocation15 + $0x160] sm:$0xff]
    %v496 = vld [vmem:[#allocation15 + $0x168] sm:$0xff]
    %v497 = vld [vmem:[#allocation15 + $0x170] sm:$0xff]
    %v498 = vld [vmem:[#allocation15 + $0x178] sm:$0xff]
    %v499 = vld [vmem:[#allocation15 + $0x180] sm:$0xff]
    %v500 = vld [vmem:[#allocation15 + $0x188] sm:$0xff]
    %v501 = vld [vmem:[#allocation15 + $0x190] sm:$0xff]
    %v502 = vld [vmem:[#allocation15 + $0x198] sm:$0xff]
    %v503 = vld [vmem:[#allocation15 + $0x1a0] sm:$0xff]
    %v504 = vld [vmem:[#allocation15 + $0x1a8] sm:$0xff]
    %v505 = vld [vmem:[#allocation15 + $0x1b0] sm:$0xff]
    %v506 = vld [vmem:[#allocation15 + $0x1b8] sm:$0xff]
    %v507 = vld [vmem:[#allocation15 + $0x1c0] sm:$0xff]
    %v508 = vld [vmem:[#allocation15 + $0x1c8] sm:$0xff]
    %v509 = vld [vmem:[#allocation15 + $0x1d0] sm:$0xff]
    %v510 = vld [vmem:[#allocation15 + $0x1d8] sm:$0xff]
    %v511 = vld [vmem:[#allocation15 + $0x1e0] sm:$0xff]
    %v512 = vld [vmem:[#allocation15 + $0x1e8] sm:$0xff]
    %v513 = vld [vmem:[#allocation15 + $0x1f0] sm:$0xff]
    %v514 = vld [vmem:[#allocation15 + $0x1f8] sm:$0xff]
    %v515 = vld [vmem:[#allocation15 + $0x200] sm:$0xff]
    %v516 = vld [vmem:[#allocation15 + $0x208] sm:$0xff]
    %v517 = vld [vmem:[#allocation15 + $0x210] sm:$0xff]
    %v518 = vld [vmem:[#allocation15 + $0x218] sm:$0xff]
    %519 = vmatpush.msra.mxu0 %v515
    %520 = vmatpush.msra.mxu0 %v511
    %521 = vmatpush.msra.mxu0 %v507
    %522 = vmatpush.msra.mxu0 %v503
    %523 = vmatpush.msra.mxu0 %v499
    %524 = vmatpush.msra.mxu0 %v495
    %525 = vmatpush.msra.mxu0 %v491
    %526 = vmatpush.msra.mxu0 %v487
    %527 = vmatpush.msra.mxu0 %v483
    %528 = vmatpush.msra.mxu0 %v479
    %529 = vmatpush.msra.mxu0 %v475
    %530 = vmatpush.msra.mxu0 %v471
    %531 = vmatpush.msra.mxu0 %v467
    %532 = vmatpush.msra.mxu0 %v463
    %533 = vmatpush.msra.mxu0 %v459
    %534 = vmatpush.msra.mxu0 %v455
    %535 = vmatmul.f32.gmra.mxu0 %v446
    %v536 = vpop.f32.mrf.mxu0
    %v537 = vadd.f32 0.0, %v536
    %538 = vdwg.mxu0
    %539 = vmatpush.msra.mxu0 %v516
    %540 = vmatpush.msra.mxu0 %v512
    %541 = vmatpush.msra.mxu0 %v508
    %542 = vmatpush.msra.mxu0 %v504
    %543 = vmatpush.msra.mxu0 %v500
    %544 = vmatpush.msra.mxu0 %v496
    %545 = vmatpush.msra.mxu0 %v492
    %546 = vmatpush.msra.mxu0 %v488
    %547 = vmatpush.msra.mxu0 %v484
    %548 = vmatpush.msra.mxu0 %v480
    %549 = vmatpush.msra.mxu0 %v476
    %550 = vmatpush.msra.mxu0 %v472
    %551 = vmatpush.msra.mxu0 %v468
    %552 = vmatpush.msra.mxu0 %v464
    %553 = vmatpush.msra.mxu0 %v460
    %554 = vmatpush.msra.mxu0 %v456
    %555 = vmatmul.f32.gmra.mxu0 %v446
    %v556 = vpop.f32.mrf.mxu0
    %v557 = vadd.f32 0.0, %v556
    %558 = vdwg.mxu0
    %559 = vmatpush.msra.mxu0 %v517
    %560 = vmatpush.msra.mxu0 %v513
    %561 = vmatpush.msra.mxu0 %v509
    %562 = vmatpush.msra.mxu0 %v505
    %563 = vmatpush.msra.mxu0 %v501
    %564 = vmatpush.msra.mxu0 %v497
    %565 = vmatpush.msra.mxu0 %v493
    %566 = vmatpush.msra.mxu0 %v489
    %567 = vmatpush.msra.mxu0 %v485
    %568 = vmatpush.msra.mxu0 %v481
    %569 = vmatpush.msra.mxu0 %v477
    %570 = vmatpush.msra.mxu0 %v473
    %571 = vmatpush.msra.mxu0 %v469
    %572 = vmatpush.msra.mxu0 %v465
    %573 = vmatpush.msra.mxu0 %v461
    %574 = vmatpush.msra.mxu0 %v457
    %575 = vmatmul.f32.gmra.mxu0 %v446
    %v576 = vpop.f32.mrf.mxu0
    %v577 = vadd.f32 0.0, %v576
    %578 = vdwg.mxu0
    %579 = vmatpush.msra.mxu0 %v518
    %580 = vmatpush.msra.mxu0 %v514
    %581 = vmatpush.msra.mxu0 %v510
    %582 = vmatpush.msra.mxu0 %v506
    %583 = vmatpush.msra.mxu0 %v502
    %584 = vmatpush.msra.mxu0 %v498
    %585 = vmatpush.msra.mxu0 %v494
    %586 = vmatpush.msra.mxu0 %v490
    %587 = vmatpush.msra.mxu0 %v486
    %588 = vmatpush.msra.mxu0 %v482
    %589 = vmatpush.msra.mxu0 %v478
    %590 = vmatpush.msra.mxu0 %v474
    %591 = vmatpush.msra.mxu0 %v470
    %592 = vmatpush.msra.mxu0 %v466
    %593 = vmatpush.msra.mxu0 %v462
    %594 = vmatpush.msra.mxu0 %v458
    %595 = vmatmul.f32.gmra.mxu0 %v446
    %v596 = vpop.f32.mrf.mxu0
    %v597 = vadd.f32 0.0, %v596
    %598 = vdwg.mxu0
    %vm599 = vcmask 64512
    %v601 = vsel %vm599, %v447, 0
    %603 = vmatpush.msra.mxu0 0.0
    %604 = vmatpush.msra.mxu0 0.0
    %605 = vmatpush.msra.mxu0 0.0
    %606 = vmatpush.msra.mxu0 0.0
    %607 = vmatpush.msra.mxu0 0.0
    %608 = vmatpush.msra.mxu0 0.0
    %609 = vmatpush.msra.mxu0 0.0
    %610 = vmatpush.msra.mxu0 0.0
    %611 = vmatpush.msra.mxu0 0.0
    %612 = vmatpush.msra.mxu0 0.0
    %613 = vmatpush.msra.mxu0 0.0
    %614 = vmatpush.msra.mxu0 0.0
    %615 = vmatpush.msra.mxu0 0.0
    %616 = vmatpush.msra.mxu0 0.0
    %617 = vmatpush.msra.mxu0 0.0
    %618 = vmatpush.msra.mxu0 %v451
    %619 = vmatmul.f32.gmra.mxu0 %v601
    %v620 = vpop.f32.mrf.mxu0
    %v621 = vadd.f32 %v537, %v620
    %622 = vdwg.mxu0
    %623 = vmatpush.msra.mxu0 0.0
    %624 = vmatpush.msra.mxu0 0.0
    %625 = vmatpush.msra.mxu0 0.0
    %626 = vmatpush.msra.mxu0 0.0
    %627 = vmatpush.msra.mxu0 0.0
    %628 = vmatpush.msra.mxu0 0.0
    %629 = vmatpush.msra.mxu0 0.0
    %630 = vmatpush.msra.mxu0 0.0
    %631 = vmatpush.msra.mxu0 0.0
    %632 = vmatpush.msra.mxu0 0.0
    %633 = vmatpush.msra.mxu0 0.0
    %634 = vmatpush.msra.mxu0 0.0
    %635 = vmatpush.msra.mxu0 0.0
    %636 = vmatpush.msra.mxu0 0.0
    %637 = vmatpush.msra.mxu0 0.0
    %638 = vmatpush.msra.mxu0 %v452
    %639 = vmatmul.f32.gmra.mxu0 %v601
    %v640 = vpop.f32.mrf.mxu0
    %v641 = vadd.f32 %v557, %v640
    %642 = vdwg.mxu0
    %643 = vmatpush.msra.mxu0 0.0
    %644 = vmatpush.msra.mxu0 0.0
    %645 = vmatpush.msra.mxu0 0.0
    %646 = vmatpush.msra.mxu0 0.0
    %647 = vmatpush.msra.mxu0 0.0
    %648 = vmatpush.msra.mxu0 0.0
    %649 = vmatpush.msra.mxu0 0.0
    %650 = vmatpush.msra.mxu0 0.0
    %651 = vmatpush.msra.mxu0 0.0
    %652 = vmatpush.msra.mxu0 0.0
    %653 = vmatpush.msra.mxu0 0.0
    %654 = vmatpush.msra.mxu0 0.0
    %655 = vmatpush.msra.mxu0 0.0
    %656 = vmatpush.msra.mxu0 0.0
    %657 = vmatpush.msra.mxu0 0.0
    %658 = vmatpush.msra.mxu0 %v453
    %659 = vmatmul.f32.gmra.mxu0 %v601
    %v660 = vpop.f32.mrf.mxu0
    %v661 = vadd.f32 %v577, %v660
    %662 = vdwg.mxu0
    %663 = vmatpush.msra.mxu0 0.0
    %664 = vmatpush.msra.mxu0 0.0
    %665 = vmatpush.msra.mxu0 0.0
    %666 = vmatpush.msra.mxu0 0.0
    %667 = vmatpush.msra.mxu0 0.0
    %668 = vmatpush.msra.mxu0 0.0
    %669 = vmatpush.msra.mxu0 0.0
    %670 = vmatpush.msra.mxu0 0.0
    %671 = vmatpush.msra.mxu0 0.0
    %672 = vmatpush.msra.mxu0 0.0
    %673 = vmatpush.msra.mxu0 0.0
    %674 = vmatpush.msra.mxu0 0.0
    %675 = vmatpush.msra.mxu0 0.0
    %676 = vmatpush.msra.mxu0 0.0
    %677 = vmatpush.msra.mxu0 0.0
    %678 = vmatpush.msra.mxu0 %v454
    %679 = vmatmul.f32.gmra.mxu0 %v601
    %v680 = vpop.f32.mrf.mxu0
    %v681 = vadd.f32 %v597, %v680
    %682 = vdwg.mxu0
    %v683 = vld [vmem:[#allocation15 + $0x220] sm:$0xff]
    %v684 = vld [vmem:[#allocation15 + $0x228] sm:$0xff]
    %v685 = vld [vmem:[#allocation15 + $0x230] sm:$0xff]
    %v686 = vld [vmem:[#allocation15 + $0x238] sm:$0xff]
    %v687 = vld [vmem:[#allocation15 + $0x240] sm:$0xff]
    %v688 = vld [vmem:[#allocation15 + $0x248] sm:$0xff]
    %v689 = vld [vmem:[#allocation15 + $0x250] sm:$0xff]
    %v690 = vld [vmem:[#allocation15 + $0x258] sm:$0xff]
    %v691 = vld [vmem:[#allocation15 + $0x260] sm:$0xff]
    %v692 = vld [vmem:[#allocation15 + $0x268] sm:$0xff]
    %v693 = vld [vmem:[#allocation15 + $0x270] sm:$0xff]
    %v694 = vld [vmem:[#allocation15 + $0x278] sm:$0xff]
    %v695 = vld [vmem:[#allocation15 + $0x280] sm:$0xff]
    %v696 = vld [vmem:[#allocation15 + $0x288] sm:$0xff]
    %v697 = vld [vmem:[#allocation15 + $0x290] sm:$0xff]
    %v698 = vld [vmem:[#allocation15 + $0x298] sm:$0xff]
    %v699 = vld [vmem:[#allocation15 + $0x2a0] sm:$0xff]
    %v700 = vld [vmem:[#allocation15 + $0x2a8] sm:$0xff]
    %v701 = vld [vmem:[#allocation15 + $0x2b0] sm:$0xff]
    %v702 = vld [vmem:[#allocation15 + $0x2b8] sm:$0xff]
    %v703 = vld [vmem:[#allocation15 + $0x2c0] sm:$0xff]
    %v704 = vld [vmem:[#allocation15 + $0x2c8] sm:$0xff]
    %v705 = vld [vmem:[#allocation15 + $0x2d0] sm:$0xff]
    %v706 = vld [vmem:[#allocation15 + $0x2d8] sm:$0xff]
    %v707 = vld [vmem:[#allocation15 + $0x2e0] sm:$0xff]
    %v708 = vld [vmem:[#allocation15 + $0x2e8] sm:$0xff]
    %v709 = vld [vmem:[#allocation15 + $0x2f0] sm:$0xff]
    %v710 = vld [vmem:[#allocation15 + $0x2f8] sm:$0xff]
    %v711 = vld [vmem:[#allocation15 + $0x300] sm:$0xff]
    %v712 = vld [vmem:[#allocation15 + $0x308] sm:$0xff]
    %v713 = vld [vmem:[#allocation15 + $0x310] sm:$0xff]
    %v714 = vld [vmem:[#allocation15 + $0x318] sm:$0xff]
    %v715 = vld [vmem:[#allocation15 + $0x320] sm:$0xff]
    %v716 = vld [vmem:[#allocation15 + $0x328] sm:$0xff]
    %v717 = vld [vmem:[#allocation15 + $0x330] sm:$0xff]
    %v718 = vld [vmem:[#allocation15 + $0x338] sm:$0xff]
    %v719 = vld [vmem:[#allocation15 + $0x340] sm:$0xff]
    %v720 = vld [vmem:[#allocation15 + $0x348] sm:$0xff]
    %v721 = vld [vmem:[#allocation15 + $0x350] sm:$0xff]
    %v722 = vld [vmem:[#allocation15 + $0x358] sm:$0xff]
    %v723 = vld [vmem:[#allocation15 + $0x360] sm:$0xff]
    %v724 = vld [vmem:[#allocation15 + $0x368] sm:$0xff]
    %v725 = vld [vmem:[#allocation15 + $0x370] sm:$0xff]
    %v726 = vld [vmem:[#allocation15 + $0x378] sm:$0xff]
    %v727 = vld [vmem:[#allocation15 + $0x380] sm:$0xff]
    %v728 = vld [vmem:[#allocation15 + $0x388] sm:$0xff]
    %v729 = vld [vmem:[#allocation15 + $0x390] sm:$0xff]
    %v730 = vld [vmem:[#allocation15 + $0x398] sm:$0xff]
    %v731 = vld [vmem:[#allocation15 + $0x3a0] sm:$0xff]
    %v732 = vld [vmem:[#allocation15 + $0x3a8] sm:$0xff]
    %v733 = vld [vmem:[#allocation15 + $0x3b0] sm:$0xff]
    %v734 = vld [vmem:[#allocation15 + $0x3b8] sm:$0xff]
    %v735 = vld [vmem:[#allocation15 + $0x3c0] sm:$0xff]
    %v736 = vld [vmem:[#allocation15 + $0x3c8] sm:$0xff]
    %v737 = vld [vmem:[#allocation15 + $0x3d0] sm:$0xff]
    %v738 = vld [vmem:[#allocation15 + $0x3d8] sm:$0xff]
    %v739 = vld [vmem:[#allocation15 + $0x3e0] sm:$0xff]
    %v740 = vld [vmem:[#allocation15 + $0x3e8] sm:$0xff]
    %v741 = vld [vmem:[#allocation15 + $0x3f0] sm:$0xff]
    %v742 = vld [vmem:[#allocation15 + $0x3f8] sm:$0xff]
    %v743 = vld [vmem:[#allocation15 + $0x400] sm:$0xff]
    %v744 = vld [vmem:[#allocation15 + $0x408] sm:$0xff]
    %v745 = vld [vmem:[#allocation15 + $0x410] sm:$0xff]
    %v746 = vld [vmem:[#allocation15 + $0x418] sm:$0xff]
    %747 = vmatpush.msra.mxu0 %v743
    %748 = vmatpush.msra.mxu0 %v739
    %749 = vmatpush.msra.mxu0 %v735
    %750 = vmatpush.msra.mxu0 %v731
    %751 = vmatpush.msra.mxu0 %v727
    %752 = vmatpush.msra.mxu0 %v723
    %753 = vmatpush.msra.mxu0 %v719
    %754 = vmatpush.msra.mxu0 %v715
    %755 = vmatpush.msra.mxu0 %v711
    %756 = vmatpush.msra.mxu0 %v707
    %757 = vmatpush.msra.mxu0 %v703
    %758 = vmatpush.msra.mxu0 %v699
    %759 = vmatpush.msra.mxu0 %v695
    %760 = vmatpush.msra.mxu0 %v691
    %761 = vmatpush.msra.mxu0 %v687
    %762 = vmatpush.msra.mxu0 %v683
    %763 = vmatmul.f32.gmra.mxu0 %v448
    %v764 = vpop.f32.mrf.mxu0
    %v765 = vadd.f32 0.0, %v764
    %766 = vdwg.mxu0
    %767 = vmatpush.msra.mxu0 %v744
    %768 = vmatpush.msra.mxu0 %v740
    %769 = vmatpush.msra.mxu0 %v736
    %770 = vmatpush.msra.mxu0 %v732
    %771 = vmatpush.msra.mxu0 %v728
    %772 = vmatpush.msra.mxu0 %v724
    %773 = vmatpush.msra.mxu0 %v720
    %774 = vmatpush.msra.mxu0 %v716
    %775 = vmatpush.msra.mxu0 %v712
    %776 = vmatpush.msra.mxu0 %v708
    %777 = vmatpush.msra.mxu0 %v704
    %778 = vmatpush.msra.mxu0 %v700
    %779 = vmatpush.msra.mxu0 %v696
    %780 = vmatpush.msra.mxu0 %v692
    %781 = vmatpush.msra.mxu0 %v688
    %782 = vmatpush.msra.mxu0 %v684
    %783 = vmatmul.f32.gmra.mxu0 %v448
    %v784 = vpop.f32.mrf.mxu0
    %v785 = vadd.f32 0.0, %v784
    %786 = vdwg.mxu0
    %787 = vmatpush.msra.mxu0 %v745
    %788 = vmatpush.msra.mxu0 %v741
    %789 = vmatpush.msra.mxu0 %v737
    %790 = vmatpush.msra.mxu0 %v733
    %791 = vmatpush.msra.mxu0 %v729
    %792 = vmatpush.msra.mxu0 %v725
    %793 = vmatpush.msra.mxu0 %v721
    %794 = vmatpush.msra.mxu0 %v717
    %795 = vmatpush.msra.mxu0 %v713
    %796 = vmatpush.msra.mxu0 %v709
    %797 = vmatpush.msra.mxu0 %v705
    %798 = vmatpush.msra.mxu0 %v701
    %799 = vmatpush.msra.mxu0 %v697
    %800 = vmatpush.msra.mxu0 %v693
    %801 = vmatpush.msra.mxu0 %v689
    %802 = vmatpush.msra.mxu0 %v685
    %803 = vmatmul.f32.gmra.mxu0 %v448
    %v804 = vpop.f32.mrf.mxu0
    %v805 = vadd.f32 0.0, %v804
    %806 = vdwg.mxu0
    %807 = vmatpush.msra.mxu0 %v746
    %808 = vmatpush.msra.mxu0 %v742
    %809 = vmatpush.msra.mxu0 %v738
    %810 = vmatpush.msra.mxu0 %v734
    %811 = vmatpush.msra.mxu0 %v730
    %812 = vmatpush.msra.mxu0 %v726
    %813 = vmatpush.msra.mxu0 %v722
    %814 = vmatpush.msra.mxu0 %v718
    %815 = vmatpush.msra.mxu0 %v714
    %816 = vmatpush.msra.mxu0 %v710
    %817 = vmatpush.msra.mxu0 %v706
    %818 = vmatpush.msra.mxu0 %v702
    %819 = vmatpush.msra.mxu0 %v698
    %820 = vmatpush.msra.mxu0 %v694
    %821 = vmatpush.msra.mxu0 %v690
    %822 = vmatpush.msra.mxu0 %v686
    %823 = vmatmul.f32.gmra.mxu0 %v448
    %v824 = vpop.f32.mrf.mxu0
    %v825 = vadd.f32 0.0, %v824
    %826 = vdwg.mxu0
    %v827 = vadd.f32 %v621, %v765
    %v828 = vadd.f32 %v641, %v785
    %v829 = vadd.f32 %v661, %v805
    %v830 = vadd.f32 %v681, %v825
    %v832 = vperm.slane %v450, 0
    %v833 = vperm.slane %v450, 1
    %v834 = vperm.slane %v450, 2
    %v835 = vperm.slane %v450, 3
    %v840 = vadd.f32 %v827, %v832
    %v841 = vadd.f32 %v828, %v833
    %v842 = vadd.f32 %v829, %v834
    %v843 = vadd.f32 %v830, %v835
    %v844 = vxor.u32 %v840, 2147483648
    %v845 = vmul.f32 %v844, 1.442695
    %v846 = vpow.pop %v845
    %v847 = vadd.f32 %v846, 1.0
    %v848 = vrcp.pop %v847
    %v849 = vmul.f32 %v847, %v848
    %v850 = vsub.f32 1.0, %v849
    %v851 = vmul.f32 %v848, %v850
    %v852 = vadd.f32 %v848, %v851
    %vm853 = vweird.f32 %v847
    %vm854 = vweird.f32 %v848
    %vm855 = vmor %vm853, %vm854
    %v856 = vsel %vm855, %v848, %v852
    %v857 = vand.u32 2147483647, %v847
    %vm858 = vcmp.eq.f32.partialorder %v857, 8.507059e+37
    %v859 = vand.u32 %v847, 2147483648
    %v860 = vor.u32 1.1754944e-38, %v859
    %v861 = vsel %vm858, %v860, %v856
    %v862 = vmul.f32 1.0, %v861
    %v863 = vxor.u32 %v841, 2147483648
    %v864 = vmul.f32 %v863, 1.442695
    %v865 = vpow.pop %v864
    %v866 = vadd.f32 %v865, 1.0
    %v867 = vrcp.pop %v866
    %v868 = vmul.f32 %v866, %v867
    %v869 = vsub.f32 1.0, %v868
    %v870 = vmul.f32 %v867, %v869
    %v871 = vadd.f32 %v867, %v870
    %vm872 = vweird.f32 %v866
    %vm873 = vweird.f32 %v867
    %vm874 = vmor %vm872, %vm873
    %v875 = vsel %vm874, %v867, %v871
    %v876 = vand.u32 2147483647, %v866
    %vm877 = vcmp.eq.f32.partialorder %v876, 8.507059e+37
    %v878 = vand.u32 %v866, 2147483648
    %v879 = vor.u32 1.1754944e-38, %v878
    %v880 = vsel %vm877, %v879, %v875
    %v881 = vmul.f32 1.0, %v880
    %v882 = vtanh.pop %v842
    %v883 = vxor.u32 %v843, 2147483648
    %v884 = vmul.f32 %v883, 1.442695
    %v885 = vpow.pop %v884
    %v886 = vadd.f32 %v885, 1.0
    %v887 = vrcp.pop %v886
    %v888 = vmul.f32 %v886, %v887
    %v889 = vsub.f32 1.0, %v888
    %v890 = vmul.f32 %v887, %v889
    %v891 = vadd.f32 %v887, %v890
    %vm892 = vweird.f32 %v886
    %vm893 = vweird.f32 %v887
    %vm894 = vmor %vm892, %vm893
    %v895 = vsel %vm894, %v887, %v891
    %v896 = vand.u32 2147483647, %v886
    %vm897 = vcmp.eq.f32.partialorder %v896, 8.507059e+37
    %v898 = vand.u32 %v886, 2147483648
    %v899 = vor.u32 1.1754944e-38, %v898
    %v900 = vsel %vm897, %v899, %v895
    %v901 = vmul.f32 1.0, %v900
    %v902 = vmul.f32 %v881, %v449
    %v903 = vmul.f32 %v862, %v882
    %v904 = vadd.f32 %v902, %v903
    %v905 = vtanh.pop %v904
    %v906 = vmul.f32 %v901, %v905
    %907 = vst [vmem:[#allocation18] sm:$0x3] %v906
    %908 = vst [vmem:[#allocation18 + $0x2] sm:$0x3] %v904
    %v909 = vld [vmem:[%s269] sm:$0x3]
    %s910 = scalar_lea.vmem [#allocation9], 2
    %v911 = vld [vmem:[%s910] sm:$0x3]
    %s912 = scalar_lea.vmem [#allocation17], 1
    %v913 = vld [vmem:[%s912] ss:$2 sm:$0xf]
    %v914 = vld [vmem:[#allocation15 + $0x420] sm:$0xff]
    %v915 = vld [vmem:[#allocation15 + $0x428] sm:$0xff]
    %v916 = vld [vmem:[#allocation15 + $0x430] sm:$0xff]
    %v917 = vld [vmem:[#allocation15 + $0x438] sm:$0xff]
    %v918 = vld [vmem:[#allocation15 + $0x440] sm:$0xff]
    %v919 = vld [vmem:[#allocation15 + $0x448] sm:$0xff]
    %v920 = vld [vmem:[#allocation15 + $0x450] sm:$0xff]
    %v921 = vld [vmem:[#allocation15 + $0x458] sm:$0xff]
    %v922 = vld [vmem:[#allocation15 + $0x460] sm:$0xff]
    %v923 = vld [vmem:[#allocation15 + $0x468] sm:$0xff]
    %v924 = vld [vmem:[#allocation15 + $0x470] sm:$0xff]
    %v925 = vld [vmem:[#allocation15 + $0x478] sm:$0xff]
    %v926 = vld [vmem:[#allocation15 + $0x480] sm:$0xff]
    %v927 = vld [vmem:[#allocation15 + $0x488] sm:$0xff]
    %v928 = vld [vmem:[#allocation15 + $0x490] sm:$0xff]
    %v929 = vld [vmem:[#allocation15 + $0x498] sm:$0xff]
    %v930 = vld [vmem:[#allocation15 + $0x4a0] sm:$0xff]
    %v931 = vld [vmem:[#allocation15 + $0x4a8] sm:$0xff]
    %v932 = vld [vmem:[#allocation15 + $0x4b0] sm:$0xff]
    %v933 = vld [vmem:[#allocation15 + $0x4b8] sm:$0xff]
    %v934 = vld [vmem:[#allocation15 + $0x4c0] sm:$0xff]
    %v935 = vld [vmem:[#allocation15 + $0x4c8] sm:$0xff]
    %v936 = vld [vmem:[#allocation15 + $0x4d0] sm:$0xff]
    %v937 = vld [vmem:[#allocation15 + $0x4d8] sm:$0xff]
    %v938 = vld [vmem:[#allocation15 + $0x4e0] sm:$0xff]
    %v939 = vld [vmem:[#allocation15 + $0x4e8] sm:$0xff]
    %v940 = vld [vmem:[#allocation15 + $0x4f0] sm:$0xff]
    %v941 = vld [vmem:[#allocation15 + $0x4f8] sm:$0xff]
    %v942 = vld [vmem:[#allocation15 + $0x500] sm:$0xff]
    %v943 = vld [vmem:[#allocation15 + $0x508] sm:$0xff]
    %v944 = vld [vmem:[#allocation15 + $0x510] sm:$0xff]
    %v945 = vld [vmem:[#allocation15 + $0x518] sm:$0xff]
    %v946 = vld [vmem:[#allocation15 + $0x520] sm:$0xff]
    %v947 = vld [vmem:[#allocation15 + $0x528] sm:$0xff]
    %v948 = vld [vmem:[#allocation15 + $0x530] sm:$0xff]
    %v949 = vld [vmem:[#allocation15 + $0x538] sm:$0xff]
    %v950 = vld [vmem:[#allocation15 + $0x540] sm:$0xff]
    %v951 = vld [vmem:[#allocation15 + $0x548] sm:$0xff]
    %v952 = vld [vmem:[#allocation15 + $0x550] sm:$0xff]
    %v953 = vld [vmem:[#allocation15 + $0x558] sm:$0xff]
    %v954 = vld [vmem:[#allocation15 + $0x560] sm:$0xff]
    %v955 = vld [vmem:[#allocation15 + $0x568] sm:$0xff]
    %v956 = vld [vmem:[#allocation15 + $0x570] sm:$0xff]
    %v957 = vld [vmem:[#allocation15 + $0x578] sm:$0xff]
    %v958 = vld [vmem:[#allocation15 + $0x580] sm:$0xff]
    %v959 = vld [vmem:[#allocation15 + $0x588] sm:$0xff]
    %v960 = vld [vmem:[#allocation15 + $0x590] sm:$0xff]
    %v961 = vld [vmem:[#allocation15 + $0x598] sm:$0xff]
    %v962 = vld [vmem:[#allocation15 + $0x5a0] sm:$0xff]
    %v963 = vld [vmem:[#allocation15 + $0x5a8] sm:$0xff]
    %v964 = vld [vmem:[#allocation15 + $0x5b0] sm:$0xff]
    %v965 = vld [vmem:[#allocation15 + $0x5b8] sm:$0xff]
    %v966 = vld [vmem:[#allocation15 + $0x5c0] sm:$0xff]
    %v967 = vld [vmem:[#allocation15 + $0x5c8] sm:$0xff]
    %v968 = vld [vmem:[#allocation15 + $0x5d0] sm:$0xff]
    %v969 = vld [vmem:[#allocation15 + $0x5d8] sm:$0xff]
    %v970 = vld [vmem:[#allocation15 + $0x5e0] sm:$0xff]
    %v971 = vld [vmem:[#allocation15 + $0x5e8] sm:$0xff]
    %v972 = vld [vmem:[#allocation15 + $0x5f0] sm:$0xff]
    %v973 = vld [vmem:[#allocation15 + $0x5f8] sm:$0xff]
    %v974 = vld [vmem:[#allocation15 + $0x600] sm:$0xff]
    %v975 = vld [vmem:[#allocation15 + $0x608] sm:$0xff]
    %v976 = vld [vmem:[#allocation15 + $0x610] sm:$0xff]
    %v977 = vld [vmem:[#allocation15 + $0x618] sm:$0xff]
    %v978 = vld [vmem:[#allocation15 + $0x620] sm:$0xff]
    %v979 = vld [vmem:[#allocation15 + $0x628] sm:$0xff]
    %v980 = vld [vmem:[#allocation15 + $0x630] sm:$0xff]
    %v981 = vld [vmem:[#allocation15 + $0x638] sm:$0xff]
    %v982 = vld [vmem:[#allocation15 + $0x640] sm:$0xff]
    %v983 = vld [vmem:[#allocation15 + $0x648] sm:$0xff]
    %v984 = vld [vmem:[#allocation15 + $0x650] sm:$0xff]
    %v985 = vld [vmem:[#allocation15 + $0x658] sm:$0xff]
    %v986 = vld [vmem:[#allocation15 + $0x660] sm:$0xff]
    %v987 = vld [vmem:[#allocation15 + $0x668] sm:$0xff]
    %v988 = vld [vmem:[#allocation15 + $0x670] sm:$0xff]
    %v989 = vld [vmem:[#allocation15 + $0x678] sm:$0xff]
    %v990 = vld [vmem:[#allocation15 + $0x680] sm:$0xff]
    %v991 = vld [vmem:[#allocation15 + $0x688] sm:$0xff]
    %v992 = vld [vmem:[#allocation15 + $0x690] sm:$0xff]
    %v993 = vld [vmem:[#allocation15 + $0x698] sm:$0xff]
    %v994 = vld [vmem:[#allocation15 + $0x6a0] sm:$0xff]
    %v995 = vld [vmem:[#allocation15 + $0x6a8] sm:$0xff]
    %v996 = vld [vmem:[#allocation15 + $0x6b0] sm:$0xff]
    %v997 = vld [vmem:[#allocation15 + $0x6b8] sm:$0xff]
    %v998 = vld [vmem:[#allocation15 + $0x6c0] sm:$0xff]
    %v999 = vld [vmem:[#allocation15 + $0x6c8] sm:$0xff]
    %v1000 = vld [vmem:[#allocation15 + $0x6d0] sm:$0xff]
    %v1001 = vld [vmem:[#allocation15 + $0x6d8] sm:$0xff]
    %v1002 = vld [vmem:[#allocation15 + $0x6e0] sm:$0xff]
    %v1003 = vld [vmem:[#allocation15 + $0x6e8] sm:$0xff]
    %v1004 = vld [vmem:[#allocation15 + $0x6f0] sm:$0xff]
    %v1005 = vld [vmem:[#allocation15 + $0x6f8] sm:$0xff]
    %v1006 = vld [vmem:[#allocation15 + $0x700] sm:$0xff]
    %v1007 = vld [vmem:[#allocation15 + $0x708] sm:$0xff]
    %v1008 = vld [vmem:[#allocation15 + $0x710] sm:$0xff]
    %v1009 = vld [vmem:[#allocation15 + $0x718] sm:$0xff]
    %v1010 = vld [vmem:[#allocation15 + $0x720] sm:$0xff]
    %v1011 = vld [vmem:[#allocation15 + $0x728] sm:$0xff]
    %v1012 = vld [vmem:[#allocation15 + $0x730] sm:$0xff]
    %v1013 = vld [vmem:[#allocation15 + $0x738] sm:$0xff]
    %v1014 = vld [vmem:[#allocation15 + $0x740] sm:$0xff]
    %v1015 = vld [vmem:[#allocation15 + $0x748] sm:$0xff]
    %v1016 = vld [vmem:[#allocation15 + $0x750] sm:$0xff]
    %v1017 = vld [vmem:[#allocation15 + $0x758] sm:$0xff]
    %v1018 = vld [vmem:[#allocation15 + $0x760] sm:$0xff]
    %v1019 = vld [vmem:[#allocation15 + $0x768] sm:$0xff]
    %v1020 = vld [vmem:[#allocation15 + $0x770] sm:$0xff]
    %v1021 = vld [vmem:[#allocation15 + $0x778] sm:$0xff]
    %v1022 = vld [vmem:[#allocation15 + $0x780] sm:$0xff]
    %v1023 = vld [vmem:[#allocation15 + $0x788] sm:$0xff]
    %v1024 = vld [vmem:[#allocation15 + $0x790] sm:$0xff]
    %v1025 = vld [vmem:[#allocation15 + $0x798] sm:$0xff]
    %v1026 = vld [vmem:[#allocation15 + $0x7a0] sm:$0xff]
    %v1027 = vld [vmem:[#allocation15 + $0x7a8] sm:$0xff]
    %v1028 = vld [vmem:[#allocation15 + $0x7b0] sm:$0xff]
    %v1029 = vld [vmem:[#allocation15 + $0x7b8] sm:$0xff]
    %v1030 = vld [vmem:[#allocation15 + $0x7c0] sm:$0xff]
    %v1031 = vld [vmem:[#allocation15 + $0x7c8] sm:$0xff]
    %v1032 = vld [vmem:[#allocation15 + $0x7d0] sm:$0xff]
    %v1033 = vld [vmem:[#allocation15 + $0x7d8] sm:$0xff]
    %v1034 = vld [vmem:[#allocation15 + $0x7e0] sm:$0xff]
    %v1035 = vld [vmem:[#allocation15 + $0x7e8] sm:$0xff]
    %v1036 = vld [vmem:[#allocation15 + $0x7f0] sm:$0xff]
    %v1037 = vld [vmem:[#allocation15 + $0x7f8] sm:$0xff]
    %v1038 = vld [vmem:[#allocation15 + $0x800] sm:$0xff]
    %v1039 = vld [vmem:[#allocation15 + $0x808] sm:$0xff]
    %v1040 = vld [vmem:[#allocation15 + $0x810] sm:$0xff]
    %v1041 = vld [vmem:[#allocation15 + $0x818] sm:$0xff]
    %1042 = vmatpush.msra.mxu0 %v1038
    %1043 = vmatpush.msra.mxu0 %v1034
    %1044 = vmatpush.msra.mxu0 %v1030
    %1045 = vmatpush.msra.mxu0 %v1026
    %1046 = vmatpush.msra.mxu0 %v1022
    %1047 = vmatpush.msra.mxu0 %v1018
    %1048 = vmatpush.msra.mxu0 %v1014
    %1049 = vmatpush.msra.mxu0 %v1010
    %1050 = vmatpush.msra.mxu0 %v1006
    %1051 = vmatpush.msra.mxu0 %v1002
    %1052 = vmatpush.msra.mxu0 %v998
    %1053 = vmatpush.msra.mxu0 %v994
    %1054 = vmatpush.msra.mxu0 %v990
    %1055 = vmatpush.msra.mxu0 %v986
    %1056 = vmatpush.msra.mxu0 %v982
    %1057 = vmatpush.msra.mxu0 %v978
    %1058 = vmatmul.f32.gmra.mxu0 %v909
    %v1059 = vpop.f32.mrf.mxu0
    %v1060 = vadd.f32 0.0, %v1059
    %1061 = vdwg.mxu0
    %1062 = vmatpush.msra.mxu0 %v1039
    %1063 = vmatpush.msra.mxu0 %v1035
    %1064 = vmatpush.msra.mxu0 %v1031
    %1065 = vmatpush.msra.mxu0 %v1027
    %1066 = vmatpush.msra.mxu0 %v1023
    %1067 = vmatpush.msra.mxu0 %v1019
    %1068 = vmatpush.msra.mxu0 %v1015
    %1069 = vmatpush.msra.mxu0 %v1011
    %1070 = vmatpush.msra.mxu0 %v1007
    %1071 = vmatpush.msra.mxu0 %v1003
    %1072 = vmatpush.msra.mxu0 %v999
    %1073 = vmatpush.msra.mxu0 %v995
    %1074 = vmatpush.msra.mxu0 %v991
    %1075 = vmatpush.msra.mxu0 %v987
    %1076 = vmatpush.msra.mxu0 %v983
    %1077 = vmatpush.msra.mxu0 %v979
    %1078 = vmatmul.f32.gmra.mxu0 %v909
    %v1079 = vpop.f32.mrf.mxu0
    %v1080 = vadd.f32 0.0, %v1079
    %1081 = vdwg.mxu0
    %1082 = vmatpush.msra.mxu0 %v1040
    %1083 = vmatpush.msra.mxu0 %v1036
    %1084 = vmatpush.msra.mxu0 %v1032
    %1085 = vmatpush.msra.mxu0 %v1028
    %1086 = vmatpush.msra.mxu0 %v1024
    %1087 = vmatpush.msra.mxu0 %v1020
    %1088 = vmatpush.msra.mxu0 %v1016
    %1089 = vmatpush.msra.mxu0 %v1012
    %1090 = vmatpush.msra.mxu0 %v1008
    %1091 = vmatpush.msra.mxu0 %v1004
    %1092 = vmatpush.msra.mxu0 %v1000
    %1093 = vmatpush.msra.mxu0 %v996
    %1094 = vmatpush.msra.mxu0 %v992
    %1095 = vmatpush.msra.mxu0 %v988
    %1096 = vmatpush.msra.mxu0 %v984
    %1097 = vmatpush.msra.mxu0 %v980
    %1098 = vmatmul.f32.gmra.mxu0 %v909
    %v1099 = vpop.f32.mrf.mxu0
    %v1100 = vadd.f32 0.0, %v1099
    %1101 = vdwg.mxu0
    %1102 = vmatpush.msra.mxu0 %v1041
    %1103 = vmatpush.msra.mxu0 %v1037
    %1104 = vmatpush.msra.mxu0 %v1033
    %1105 = vmatpush.msra.mxu0 %v1029
    %1106 = vmatpush.msra.mxu0 %v1025
    %1107 = vmatpush.msra.mxu0 %v1021
    %1108 = vmatpush.msra.mxu0 %v1017
    %1109 = vmatpush.msra.mxu0 %v1013
    %1110 = vmatpush.msra.mxu0 %v1009
    %1111 = vmatpush.msra.mxu0 %v1005
    %1112 = vmatpush.msra.mxu0 %v1001
    %1113 = vmatpush.msra.mxu0 %v997
    %1114 = vmatpush.msra.mxu0 %v993
    %1115 = vmatpush.msra.mxu0 %v989
    %1116 = vmatpush.msra.mxu0 %v985
    %1117 = vmatpush.msra.mxu0 %v981
    %1118 = vmatmul.f32.gmra.mxu0 %v909
    %v1119 = vpop.f32.mrf.mxu0
    %v1120 = vadd.f32 0.0, %v1119
    %1121 = vdwg.mxu0
    %1122 = vmatpush.msra.mxu0 %v974
    %1123 = vmatpush.msra.mxu0 %v970
    %1124 = vmatpush.msra.mxu0 %v966
    %1125 = vmatpush.msra.mxu0 %v962
    %1126 = vmatpush.msra.mxu0 %v958
    %1127 = vmatpush.msra.mxu0 %v954
    %1128 = vmatpush.msra.mxu0 %v950
    %1129 = vmatpush.msra.mxu0 %v946
    %1130 = vmatpush.msra.mxu0 %v942
    %1131 = vmatpush.msra.mxu0 %v938
    %1132 = vmatpush.msra.mxu0 %v934
    %1133 = vmatpush.msra.mxu0 %v930
    %1134 = vmatpush.msra.mxu0 %v926
    %1135 = vmatpush.msra.mxu0 %v922
    %1136 = vmatpush.msra.mxu0 %v918
    %1137 = vmatpush.msra.mxu0 %v914
    %1138 = vmatmul.f32.gmra.mxu0 %v906
    %v1139 = vpop.f32.mrf.mxu0
    %v1140 = vadd.f32 %v1060, %v1139
    %1141 = vdwg.mxu0
    %1142 = vmatpush.msra.mxu0 %v975
    %1143 = vmatpush.msra.mxu0 %v971
    %1144 = vmatpush.msra.mxu0 %v967
    %1145 = vmatpush.msra.mxu0 %v963
    %1146 = vmatpush.msra.mxu0 %v959
    %1147 = vmatpush.msra.mxu0 %v955
    %1148 = vmatpush.msra.mxu0 %v951
    %1149 = vmatpush.msra.mxu0 %v947
    %1150 = vmatpush.msra.mxu0 %v943
    %1151 = vmatpush.msra.mxu0 %v939
    %1152 = vmatpush.msra.mxu0 %v935
    %1153 = vmatpush.msra.mxu0 %v931
    %1154 = vmatpush.msra.mxu0 %v927
    %1155 = vmatpush.msra.mxu0 %v923
    %1156 = vmatpush.msra.mxu0 %v919
    %1157 = vmatpush.msra.mxu0 %v915
    %1158 = vmatmul.f32.gmra.mxu0 %v906
    %v1159 = vpop.f32.mrf.mxu0
    %v1160 = vadd.f32 %v1080, %v1159
    %1161 = vdwg.mxu0
    %1162 = vmatpush.msra.mxu0 %v976
    %1163 = vmatpush.msra.mxu0 %v972
    %1164 = vmatpush.msra.mxu0 %v968
    %1165 = vmatpush.msra.mxu0 %v964
    %1166 = vmatpush.msra.mxu0 %v960
    %1167 = vmatpush.msra.mxu0 %v956
    %1168 = vmatpush.msra.mxu0 %v952
    %1169 = vmatpush.msra.mxu0 %v948
    %1170 = vmatpush.msra.mxu0 %v944
    %1171 = vmatpush.msra.mxu0 %v940
    %1172 = vmatpush.msra.mxu0 %v936
    %1173 = vmatpush.msra.mxu0 %v932
    %1174 = vmatpush.msra.mxu0 %v928
    %1175 = vmatpush.msra.mxu0 %v924
    %1176 = vmatpush.msra.mxu0 %v920
    %1177 = vmatpush.msra.mxu0 %v916
    %1178 = vmatmul.f32.gmra.mxu0 %v906
    %v1179 = vpop.f32.mrf.mxu0
    %v1180 = vadd.f32 %v1100, %v1179
    %1181 = vdwg.mxu0
    %1182 = vmatpush.msra.mxu0 %v977
    %1183 = vmatpush.msra.mxu0 %v973
    %1184 = vmatpush.msra.mxu0 %v969
    %1185 = vmatpush.msra.mxu0 %v965
    %1186 = vmatpush.msra.mxu0 %v961
    %1187 = vmatpush.msra.mxu0 %v957
    %1188 = vmatpush.msra.mxu0 %v953
    %1189 = vmatpush.msra.mxu0 %v949
    %1190 = vmatpush.msra.mxu0 %v945
    %1191 = vmatpush.msra.mxu0 %v941
    %1192 = vmatpush.msra.mxu0 %v937
    %1193 = vmatpush.msra.mxu0 %v933
    %1194 = vmatpush.msra.mxu0 %v929
    %1195 = vmatpush.msra.mxu0 %v925
    %1196 = vmatpush.msra.mxu0 %v921
    %1197 = vmatpush.msra.mxu0 %v917
    %1198 = vmatmul.f32.gmra.mxu0 %v906
    %v1199 = vpop.f32.mrf.mxu0
    %v1200 = vadd.f32 %v1120, %v1199
    %1201 = vdwg.mxu0
    %v1203 = vperm.slane %v913, 0
    %v1204 = vperm.slane %v913, 1
    %v1205 = vperm.slane %v913, 2
    %v1206 = vperm.slane %v913, 3
    %v1211 = vadd.f32 %v1140, %v1203
    %v1212 = vadd.f32 %v1160, %v1204
    %v1213 = vadd.f32 %v1180, %v1205
    %v1214 = vadd.f32 %v1200, %v1206
    %v1215 = vxor.u32 %v1211, 2147483648
    %v1216 = vmul.f32 %v1215, 1.442695
    %v1217 = vpow.pop %v1216
    %v1218 = vadd.f32 %v1217, 1.0
    %v1219 = vrcp.pop %v1218
    %v1220 = vmul.f32 %v1218, %v1219
    %v1221 = vsub.f32 1.0, %v1220
    %v1222 = vmul.f32 %v1219, %v1221
    %v1223 = vadd.f32 %v1219, %v1222
    %vm1224 = vweird.f32 %v1218
    %vm1225 = vweird.f32 %v1219
    %vm1226 = vmor %vm1224, %vm1225
    %v1227 = vsel %vm1226, %v1219, %v1223
    %v1228 = vand.u32 2147483647, %v1218
    %vm1229 = vcmp.eq.f32.partialorder %v1228, 8.507059e+37
    %v1230 = vand.u32 %v1218, 2147483648
    %v1231 = vor.u32 1.1754944e-38, %v1230
    %v1232 = vsel %vm1229, %v1231, %v1227
    %v1233 = vmul.f32 1.0, %v1232
    %v1234 = vxor.u32 %v1212, 2147483648
    %v1235 = vmul.f32 %v1234, 1.442695
    %v1236 = vpow.pop %v1235
    %v1237 = vadd.f32 %v1236, 1.0
    %v1238 = vrcp.pop %v1237
    %v1239 = vmul.f32 %v1237, %v1238
    %v1240 = vsub.f32 1.0, %v1239
    %v1241 = vmul.f32 %v1238, %v1240
    %v1242 = vadd.f32 %v1238, %v1241
    %vm1243 = vweird.f32 %v1237
    %vm1244 = vweird.f32 %v1238
    %vm1245 = vmor %vm1243, %vm1244
    %v1246 = vsel %vm1245, %v1238, %v1242
    %v1247 = vand.u32 2147483647, %v1237
    %vm1248 = vcmp.eq.f32.partialorder %v1247, 8.507059e+37
    %v1249 = vand.u32 %v1237, 2147483648
    %v1250 = vor.u32 1.1754944e-38, %v1249
    %v1251 = vsel %vm1248, %v1250, %v1246
    %v1252 = vmul.f32 1.0, %v1251
    %v1253 = vtanh.pop %v1213
    %v1254 = vxor.u32 %v1214, 2147483648
    %v1255 = vmul.f32 %v1254, 1.442695
    %v1256 = vpow.pop %v1255
    %v1257 = vadd.f32 %v1256, 1.0
    %v1258 = vrcp.pop %v1257
    %v1259 = vmul.f32 %v1257, %v1258
    %v1260 = vsub.f32 1.0, %v1259
    %v1261 = vmul.f32 %v1258, %v1260
    %v1262 = vadd.f32 %v1258, %v1261
    %vm1263 = vweird.f32 %v1257
    %vm1264 = vweird.f32 %v1258
    %vm1265 = vmor %vm1263, %vm1264
    %v1266 = vsel %vm1265, %v1258, %v1262
    %v1267 = vand.u32 2147483647, %v1257
    %vm1268 = vcmp.eq.f32.partialorder %v1267, 8.507059e+37
    %v1269 = vand.u32 %v1257, 2147483648
    %v1270 = vor.u32 1.1754944e-38, %v1269
    %v1271 = vsel %vm1268, %v1270, %v1266
    %v1272 = vmul.f32 1.0, %v1271
    %v1273 = vmul.f32 %v1252, %v911
    %v1274 = vmul.f32 %v1233, %v1253
    %v1275 = vadd.f32 %v1273, %v1274
    %v1276 = vtanh.pop %v1275
    %v1277 = vmul.f32 %v1272, %v1276
    %s1278 = scalar_lea.vmem [#allocation18], 4
    %1279 = vst [vmem:[%s1278] sm:$0x3] %v1277
    %1280 = vst [vmem:[%s1278 + $0x2] sm:$0x3] %v1275
    %v1281 = vld [vmem:[%s7] sm:$0xff]
    %v1282 = vld [vmem:[%s7 + $0x8] sm:$0xff]
    %v1283 = vld [vmem:[%s7 + $0x10] sm:$0xff]
    %v1284 = vld [vmem:[%s7 + $0x18] sm:$0xff]
    %v1285 = vld [vmem:[%s7 + $0x20] sm:$0xff]
    %v1286 = vld [vmem:[%s7 + $0x28] sm:$0xff]
    %v1287 = vld [vmem:[%s7 + $0x30] sm:$0xff]
    %v1288 = vld [vmem:[%s7 + $0x38] sm:$0xff]
    %v1289 = vld [vmem:[%s7 + $0x40] sm:$0xff]
    %v1290 = vld [vmem:[%s7 + $0x48] sm:$0xff]
    %v1291 = vld [vmem:[%s7 + $0x50] sm:$0xff]
    %v1292 = vld [vmem:[%s7 + $0x58] sm:$0xff]
    %v1293 = vld [vmem:[%s7 + $0x60] sm:$0xff]
    %v1294 = vld [vmem:[%s7 + $0x68] sm:$0xff]
    %v1295 = vld [vmem:[%s7 + $0x70] sm:$0xff]
    %v1296 = vld [vmem:[%s7 + $0x78] sm:$0xff]
    %v1297 = vld [vmem:[#allocation2] sm:$0x1]
    %v1299 = vperm.slane %v1297, 0
    %1301 = vmatpush.msra.mxu0 %v1296
    %1302 = vmatpush.msra.mxu0 %v1295
    %1303 = vmatpush.msra.mxu0 %v1294
    %1304 = vmatpush.msra.mxu0 %v1293
    %1305 = vmatpush.msra.mxu0 %v1292
    %1306 = vmatpush.msra.mxu0 %v1291
    %1307 = vmatpush.msra.mxu0 %v1290
    %1308 = vmatpush.msra.mxu0 %v1289
    %1309 = vmatpush.msra.mxu0 %v1288
    %1310 = vmatpush.msra.mxu0 %v1287
    %1311 = vmatpush.msra.mxu0 %v1286
    %1312 = vmatpush.msra.mxu0 %v1285
    %1313 = vmatpush.msra.mxu0 %v1284
    %1314 = vmatpush.msra.mxu0 %v1283
    %1315 = vmatpush.msra.mxu0 %v1282
    %1316 = vmatpush.msra.mxu0 %v1281
    %1317 = vmatmul.f32.gmra.mxu0 %v1277
    %v1318 = vpop.f32.mrf.mxu0
    %v1319 = vadd.f32 %v1299, %v1318
    %1320 = vdwg.mxu0
    %vm1321 = vcmask 1024
    %1322 = vst.msk [vmem:[%s11] sm:$0x3] %vm1321, %v1319
    // Predicated region
    $region82: #{tpu_custom_call.1} parent=1 // pred_check
      _
    $region83: #{tpu_custom_call.1} parent=1 // pred_check_branch
      %1324 = sbr.rel (0) target = $region85
    $region84: #{tpu_custom_call.1} parent=1 // pred_region
      _
    $region85: #{tpu_custom_call.1} parent=1 // pred_fallthru
      _
    // Predicated region
    $region86: #{tpu_custom_call.1} parent=1 // pred_check
      _
    $region87: #{tpu_custom_call.1} parent=1 // pred_check_branch
      %1326 = sbr.rel (0) target = $region89
    $region88: #{tpu_custom_call.1} parent=1 // pred_region
      %1328 = vsyncadd [#allocation5], 0
      %s1329 = sshll.u32 [#allocation18], 4
      %s1330 = int_to_ptr.vmem [resolvable:$true] %s1329
      %s1331 = sshll.u32 %s12, 4
      %s1332 = int_to_ptr.hbm [resolvable:$true] %s1331
      %1337 = dma.vmem_to_hbm [thread:$0]  %s1330, 128, %s1332, [#allocation5], 64, 64, 4
    $region89: #{tpu_custom_call.1} parent=1 // pred_fallthru
      _
    // Predicated region
    $region90: #{tpu_custom_call.1} parent=1 // pred_check
      _
    $region91: #{tpu_custom_call.1} parent=1 // pred_check_branch
      %1339 = sbr.rel (0) target = $region93
    $region92: #{tpu_custom_call.1} parent=1 // pred_region
      _
    $region93: #{tpu_custom_call.1} parent=1 // pred_fallthru
      _
    // Predicated region
    $region94: #{tpu_custom_call.1} parent=1 // pred_check
      _
    $region95: #{tpu_custom_call.1} parent=1 // pred_check_branch
      %1341 = sbr.rel (0) target = $region97
    $region96: #{tpu_custom_call.1} parent=1 // pred_region
      %1343 = dma.done [#allocation5], 128
    $region97: #{tpu_custom_call.1} parent=1 // pred_fallthru
      _
    %1344 = vsyncpa [#allocation4], 1
    %1345 = vsyncpa [#allocation7], 1
    %1346 = vsyncpa [#allocation10], 1
    %1347 = vsyncpa [#allocation13], 1
    %1348 = vsyncpa [#allocation16], 1
    %1349 = vsyncpa [#allocation5], 1

</llo_original>
